<compile_context>
chip_gen: v5e
topology: v5e:2x2
jax: 0.10.0
libtpu: 0.0.40
codegen_flags: <defaults>
</compile_context>

<pallas_src>
import jax
import jax.numpy as jnp
from jax.experimental import pallas as pl
from jax.experimental.pallas import tpu as pltpu


def _round_up(x, m):
    return (x + m - 1) // m * m


def _pick_time_chunk(T, target=4):
    """Largest divisor of T that is <= target (keeps the in-kernel unroll small)."""
    for c in range(min(T, target), 0, -1):
        if T % c == 0:
            return c
    return 1


def _grui_kernel(x_ref, d_ref, h0_ref,
                 wx_ref, bx_ref,
                 wb_ref, bb_ref,
                 whzr_ref, whh_ref,
                 out_ref,
                 xp_s, beta_s, h_s):
    """One time-chunk of the GRUI recurrence.

    x_ref, d_ref : (Tc*Bp, I)     -- current chunk of X / Delta (matmul dtype)
    h0_ref       : (Bp, Hp)       -- initial hidden state (used at chunk 0)
    wx_ref       : (I, 3*Hp)      -- [W_xz | W_xr | W_xh]
    bx_ref       : (1, 3*Hp)      -- [b_z  | b_r  | b_h ]
    wb_ref,bb_ref: (I, Hp),(1,Hp) -- W_beta, b_beta
    whzr_ref     : (Hp, 2*Hp)     -- [W_hz | W_hr]
    whh_ref      : (Hp, Hp)       -- W_hh
    out_ref      : (Tc*Bp, Hp)    -- hidden states of this chunk
    xp_s, beta_s : VMEM scratch for per-chunk projections
    h_s          : VMEM scratch carrying H across chunks
    """
    f32 = jnp.float32
    Bp, Hp = h0_ref.shape
    rows = x_ref.shape[0]
    Tc = rows // Bp

    # ---- H-independent projections for the whole chunk (off the serial path).
    # One wide fused matmul for the z|r|h x-side pre-activations; broadcast of
    # the bias happens once per chunk (hoisted out of the time loop).
    xp_s[...] = (jnp.dot(x_ref[...], wx_ref[...], preferred_element_type=f32)
                 + bx_ref[...])
    beta_s[...] = jnp.exp(jnp.minimum(
        0.0,
        jnp.dot(d_ref[...], wb_ref[...], preferred_element_type=f32)
        + bb_ref[...]))

    # ---- Hidden-state carry: initialise once, then persist across chunks.
    @pl.when(pl.program_id(0) == 0)
    def _():
        h_s[...] = h0_ref[...].astype(f32)

    # Recurrent weights: load once per chunk, reuse across all Tc steps.
    W_hzr = whzr_ref[...]                       # (Hp, 2*Hp) = [W_hz | W_hr]
    W_hh = whh_ref[...]                         # (Hp, Hp)
    mm_dtype = W_hzr.dtype                      # f32 or bf16 MXU operands

    H = h_s[...]                                # (Bp, Hp), f32

    # ---- Serial recurrence over the chunk.  Tc is small & static, so a full
    # unroll is fine; all gate splits below are at multiples of Hp (a multiple
    # of 128), i.e. whole-vreg boundaries -- no intra-vreg lane selects.
    for t in range(Tc):
        lo = t * Bp                                         # static, 8-aligned
        pre_zr = xp_s[pl.ds(lo, Bp), pl.ds(0, 2 * Hp)]      # (Bp, 2*Hp)
        pre_h = xp_s[pl.ds(lo, Bp), pl.ds(2 * Hp, Hp)]      # (Bp, Hp)
        Hb = beta_s[pl.ds(lo, Bp), :] * H                   # beta-decayed H

        zr = jax.nn.sigmoid(
            pre_zr + jnp.dot(Hb.astype(mm_dtype), W_hzr,
                             preferred_element_type=f32))   # (Bp, 2*Hp)
        Z = zr[:, :Hp]
        R = zr[:, Hp:]

        H_tilde = jnp.tanh(
            pre_h + jnp.dot((R * Hb).astype(mm_dtype), W_hh,
                            preferred_element_type=f32))

        H = Z * Hb + (1.0 - Z) * H_tilde
        out_ref[pl.ds(lo, Bp), :] = H.astype(out_ref.dtype)

    h_s[...] = H                                # carry into the next chunk


def grui_forward(X, Delta, H0, params, *, time_chunk=None,
                 matmul_dtype=jnp.float32):
    """Pallas implementation of GRUIModel.forward.

    X, Delta: (T, B, I) float32.  H0: (B, Hd) float32 (zeros when H is None).
    Returns (T*B, Hd) float32 -- the concatenation of the per-step hiddens,
    identical to the PyTorch module's output layout.
    """
    T, B, I = X.shape
    Hd = params["W_hz"].shape[1]

    Hp = _round_up(Hd, 128)          # lane-dense hidden dim
    Bp = _round_up(B, 8)             # sublane-aligned batch
    Tc = time_chunk if time_chunk is not None else _pick_time_chunk(T)
    assert T % Tc == 0
    n_chunks = T // Tc
    rows = Tc * Bp

    # ---- Pad + flatten inputs (padded lanes/rows are provably inert). ------
    Xp = jnp.pad(X, ((0, 0), (0, Bp - B), (0, 0))).reshape(T * Bp, I)
    Dp = jnp.pad(Delta, ((0, 0), (0, Bp - B), (0, 0))).reshape(T * Bp, I)
    H0p = jnp.pad(H0, ((0, Bp - B), (0, Hp - Hd))).astype(jnp.float32)

    pad_iw = lambda w: jnp.pad(w, ((0, 0), (0, Hp - Hd)))            # (I, Hp)
    pad_hw = lambda w: jnp.pad(w, ((0, Hp - Hd), (0, Hp - Hd)))      # (Hp, Hp)
    pad_b = lambda b: jnp.pad(b, (0, Hp - Hd)).reshape(1, Hp)        # (1, Hp)

    W_xall = jnp.concatenate(
        [pad_iw(params["W_xz"]), pad_iw(params["W_xr"]), pad_iw(params["W_xh"])],
        axis=1)                                                      # (I, 3*Hp)
    b_xall = jnp.concatenate(
        [pad_b(params["b_z"]), pad_b(params["b_r"]), pad_b(params["b_h"])],
        axis=1)                                                      # (1, 3*Hp)
    W_hzr = jnp.concatenate(
        [pad_hw(params["W_hz"]), pad_hw(params["W_hr"])], axis=1)    # (Hp, 2*Hp)
    W_hh = pad_hw(params["W_hh"])                                    # (Hp, Hp)
    W_beta = pad_iw(params["W_beta"])                                # (I, Hp)
    b_beta = pad_b(params["b_beta"])                                 # (1, Hp)

    # MXU operands (bf16 on v6e/v7x keeps the MXU on its native path);
    # biases / elementwise math stay f32 and accumulation is forced to f32.
    Xp = Xp.astype(matmul_dtype)
    Dp = Dp.astype(matmul_dtype)
    W_xall = W_xall.astype(matmul_dtype)
    W_beta = W_beta.astype(matmul_dtype)
    W_hzr = W_hzr.astype(matmul_dtype)
    W_hh = W_hh.astype(matmul_dtype)

    const = lambda shp: pl.BlockSpec(shp, lambda c: (0, 0))

    grid_spec = pltpu.PrefetchScalarGridSpec(
        num_scalar_prefetch=0,
        grid=(n_chunks,),                       # serial over time chunks
        in_specs=[
            pl.BlockSpec((rows, I), lambda c: (c, 0)),   # X chunk (streamed)
            pl.BlockSpec((rows, I), lambda c: (c, 0)),   # Delta chunk
            const((Bp, Hp)),                             # H0
            const((I, 3 * Hp)),                          # [W_xz|W_xr|W_xh]
            const((1, 3 * Hp)),                          # [b_z |b_r |b_h ]
            const((I, Hp)),                              # W_beta
            const((1, Hp)),                              # b_beta
            const((Hp, 2 * Hp)),                         # [W_hz|W_hr]
            const((Hp, Hp)),                             # W_hh
        ],
        out_specs=pl.BlockSpec((rows, Hp), lambda c: (c, 0)),
        scratch_shapes=[
            pltpu.VMEM((rows, 3 * Hp), jnp.float32),     # x-side gate preacts
            pltpu.VMEM((rows, Hp), jnp.float32),         # beta
            pltpu.VMEM((Bp, Hp), jnp.float32),           # H carry across chunks
        ],
    )

    out_p = pl.pallas_call(
        _grui_kernel,
        out_shape=jax.ShapeDtypeStruct((T * Bp, Hp), jnp.float32),
        grid_spec=grid_spec,
        compiler_params=pltpu.CompilerParams(
            dimension_semantics=("arbitrary",)),          # recurrence is serial
    )(Xp, Dp, H0p, W_xall, b_xall, W_beta, b_beta, W_hzr, W_hh)

    # Strip the batch/hidden padding back to the PyTorch layout (T*B, Hd).
    return out_p.reshape(T, Bp, Hp)[:, :B, :Hd].reshape(T * B, Hd)


def grui_reference(X, Delta, H0, params):
    """Pure-JAX reference mirroring the PyTorch module, for verification."""
    T = X.shape[0]
    Hd = params["W_hz"].shape[1]
    H = H0
    outs = []
    for t in range(T):
        x, d = X[t], Delta[t]
        beta = jnp.exp(jnp.minimum(jnp.zeros(Hd),
                                   d @ params["W_beta"] + params["b_beta"]))
        H = beta * H
        Z = jax.nn.sigmoid(x @ params["W_xz"] + H @ params["W_hz"] + params["b_z"])
        R = jax.nn.sigmoid(x @ params["W_xr"] + H @ params["W_hr"] + params["b_r"])
        H_tilde = jnp.tanh(x @ params["W_xh"] + (R * H) @ params["W_hh"] + params["b_h"])
        H = Z * H + (1.0 - Z) * H_tilde
        outs.append(H)
    return jnp.concatenate(outs, axis=0)


def init_params(key, num_inputs, num_hiddens):
    ks = jax.random.split(key, 7)
    normal = lambda k, shp: (jax.random.normal(k, shp, jnp.float32) * 0.01)
    return {
        "W_xz": normal(ks[0], (num_inputs, num_hiddens)),
        "W_hz": normal(ks[1], (num_hiddens, num_hiddens)),
        "b_z": jnp.zeros((num_hiddens,), jnp.float32),
        "W_xr": normal(ks[2], (num_inputs, num_hiddens)),
        "W_hr": normal(ks[3], (num_hiddens, num_hiddens)),
        "b_r": jnp.zeros((num_hiddens,), jnp.float32),
        "W_xh": normal(ks[4], (num_inputs, num_hiddens)),
        "W_hh": normal(ks[5], (num_hiddens, num_hiddens)),
        "b_h": jnp.zeros((num_hiddens,), jnp.float32),
        "W_beta": normal(ks[6], (num_inputs, num_hiddens)),
        "b_beta": jnp.zeros((num_hiddens,), jnp.float32),
    }


if __name__ == "__main__":
    T, B, I, Hd = 8, 8, 16, 32   # seq=8, batch=8, num_inputs=16, num_hiddens=32

    key = jax.random.PRNGKey(0)
    kx, kd, kp = jax.random.split(key, 3)
    X = jax.random.normal(kx, (T, B, I), jnp.float32)
    Delta = jax.random.uniform(kd, (T, B, I), jnp.float32)
    H0 = jnp.zeros((B, Hd), jnp.float32)     # PyTorch path when H is None
    params = init_params(kp, I, Hd)

    ref = grui_reference(X, Delta, H0, params)

    # f32 MXU operands: exact PyTorch semantics (also exercises the 2-chunk
    # streamed grid and the cross-chunk H carry, since T=8 / Tc=4).
    out = jax.block_until_ready(grui_forward(X, Delta, H0, params))
    assert out.shape == (T * B, Hd)
    assert jnp.allclose(out, ref, atol=1e-5, rtol=1e-5)

    # bf16 MXU operands (v6e/v7x fast path); accumulation + gate math stay f32.
    out_bf16 = jax.block_until_ready(
        grui_forward(X, Delta, H0, params, matmul_dtype=jnp.bfloat16))
    assert jnp.allclose(out_bf16, ref, atol=2e-2, rtol=2e-2)

    print("KERNEL_OK")
</pallas_src>

<mosaic_0001>
module attributes {stable_mosaic.version = 11 : i64} {
  func.func @_grui_kernel(%arg0: i32, %arg1: memref<32x16xf32, #tpu.memory_space<vmem>>, %arg2: memref<32x16xf32, #tpu.memory_space<vmem>>, %arg3: memref<8x128xf32, #tpu.memory_space<vmem>>, %arg4: memref<16x384xf32, #tpu.memory_space<vmem>>, %arg5: memref<1x384xf32, #tpu.memory_space<vmem>>, %arg6: memref<16x128xf32, #tpu.memory_space<vmem>>, %arg7: memref<1x128xf32, #tpu.memory_space<vmem>>, %arg8: memref<128x256xf32, #tpu.memory_space<vmem>>, %arg9: memref<128x128xf32, #tpu.memory_space<vmem>>, %arg10: memref<32x128xf32, #tpu.memory_space<vmem>>, %arg11: memref<32x384xf32, #tpu.memory_space<vmem>>, %arg12: memref<32x128xf32, #tpu.memory_space<vmem>>, %arg13: memref<8x128xf32, #tpu.memory_space<vmem>>) attributes {dimension_semantics = [#tpu.dimension_semantics<arbitrary>], iteration_bounds = array<i64: 2>, scalar_prefetch = 0 : i64, scratch_operands = 3 : i64, tpu.core_type = #tpu.core_type<tc>, window_params = [{transform_indices = @transform_0, window_bounds = array<i64: 32, 16>}, {transform_indices = @transform_1, window_bounds = array<i64: 32, 16>}, {pipeline_mode = #tpu.pipeline_mode<synchronous>, transform_indices = @transform_2, window_bounds = array<i64: 8, 128>}, {pipeline_mode = #tpu.pipeline_mode<synchronous>, transform_indices = @transform_3, window_bounds = array<i64: 16, 384>}, {pipeline_mode = #tpu.pipeline_mode<synchronous>, transform_indices = @transform_4, window_bounds = array<i64: 1, 384>}, {pipeline_mode = #tpu.pipeline_mode<synchronous>, transform_indices = @transform_5, window_bounds = array<i64: 16, 128>}, {pipeline_mode = #tpu.pipeline_mode<synchronous>, transform_indices = @transform_6, window_bounds = array<i64: 1, 128>}, {pipeline_mode = #tpu.pipeline_mode<synchronous>, transform_indices = @transform_7, window_bounds = array<i64: 128, 256>}, {pipeline_mode = #tpu.pipeline_mode<synchronous>, transform_indices = @transform_8, window_bounds = array<i64: 128, 128>}, {transform_indices = @transform_9, window_bounds = array<i64: 32, 128>}]} {
    %c0 = arith.constant 0 : index
    %c0_0 = arith.constant 0 : index
    %0 = vector.load %arg1[%c0, %c0_0] : memref<32x16xf32, #tpu.memory_space<vmem>>, vector<32x16xf32>
    %c0_1 = arith.constant 0 : index
    %c0_2 = arith.constant 0 : index
    %1 = vector.load %arg4[%c0_1, %c0_2] : memref<16x384xf32, #tpu.memory_space<vmem>>, vector<16x384xf32>
    %cst = arith.constant dense<0.000000e+00> : vector<32x384xf32>
    %2 = tpu.matmul %0, %1, %cst {dimension_numbers = #tpu.dot_dimension_numbers<[1], [0], [0], [1], [0, 0, 1, 1], [], []>} : vector<32x16xf32>, vector<16x384xf32>, vector<32x384xf32> -> vector<32x384xf32>
    %c0_3 = arith.constant 0 : index
    %c0_4 = arith.constant 0 : index
    %3 = vector.load %arg5[%c0_3, %c0_4] : memref<1x384xf32, #tpu.memory_space<vmem>>, vector<1x384xf32>
    %4 = vector.broadcast %3 : vector<1x384xf32> to vector<32x384xf32>
    %5 = arith.addf %2, %4 : vector<32x384xf32>
    %c0_5 = arith.constant 0 : index
    %c0_6 = arith.constant 0 : index
    %6 = vector.load %arg11[%c0_5, %c0_6] : memref<32x384xf32, #tpu.memory_space<vmem>>, vector<32x384xf32>
    tpu.vector_store %arg11[%c0_5, %c0_6], %5 {strides = array<i32>} : memref<32x384xf32, #tpu.memory_space<vmem>>, vector<32x384xf32>,
    %c0_7 = arith.constant 0 : index
    %c0_8 = arith.constant 0 : index
    %7 = vector.load %arg2[%c0_7, %c0_8] : memref<32x16xf32, #tpu.memory_space<vmem>>, vector<32x16xf32>
    %c0_9 = arith.constant 0 : index
    %c0_10 = arith.constant 0 : index
    %8 = vector.load %arg6[%c0_9, %c0_10] : memref<16x128xf32, #tpu.memory_space<vmem>>, vector<16x128xf32>
    %cst_11 = arith.constant dense<0.000000e+00> : vector<32x128xf32>
    %9 = tpu.matmul %7, %8, %cst_11 {dimension_numbers = #tpu.dot_dimension_numbers<[1], [0], [0], [1], [0, 0, 1, 1], [], []>} : vector<32x16xf32>, vector<16x128xf32>, vector<32x128xf32> -> vector<32x128xf32>
    %c0_12 = arith.constant 0 : index
    %c0_13 = arith.constant 0 : index
    %10 = vector.load %arg7[%c0_12, %c0_13] : memref<1x128xf32, #tpu.memory_space<vmem>>, vector<1x128xf32>
    %11 = vector.broadcast %10 : vector<1x128xf32> to vector<32x128xf32>
    %12 = arith.addf %9, %11 : vector<32x128xf32>
    %cst_14 = arith.constant 0.000000e+00 : f32
    %13 = vector.broadcast %cst_14 : f32 to vector<32x128xf32>
    %14 = arith.minimumf %13, %12 : vector<32x128xf32>
    %15 = math.exp %14 : vector<32x128xf32>
    %c0_15 = arith.constant 0 : index
    %c0_16 = arith.constant 0 : index
    %16 = vector.load %arg12[%c0_15, %c0_16] : memref<32x128xf32, #tpu.memory_space<vmem>>, vector<32x128xf32>
    tpu.vector_store %arg12[%c0_15, %c0_16], %15 {strides = array<i32>} : memref<32x128xf32, #tpu.memory_space<vmem>>, vector<32x128xf32>,
    %c0_i32 = arith.constant 0 : i32
    %17 = arith.cmpi eq, %arg0, %c0_i32 : i32
    %18 = arith.extui %17 : i1 to i32
    %c0_i32_17 = arith.constant 0 : i32
    %19 = arith.cmpi ne, %18, %c0_i32_17 : i32
    scf.if %19 {
      %c0_70 = arith.constant 0 : index
      %c0_71 = arith.constant 0 : index
      %116 = vector.load %arg3[%c0_70, %c0_71] : memref<8x128xf32, #tpu.memory_space<vmem>>, vector<8x128xf32>
      %c0_72 = arith.constant 0 : index
      %c0_73 = arith.constant 0 : index
      %117 = vector.load %arg13[%c0_72, %c0_73] : memref<8x128xf32, #tpu.memory_space<vmem>>, vector<8x128xf32>
      tpu.vector_store %arg13[%c0_72, %c0_73], %116 {strides = array<i32>} : memref<8x128xf32, #tpu.memory_space<vmem>>, vector<8x128xf32>,
    } else {
    }
    %c0_18 = arith.constant 0 : index
    %c0_19 = arith.constant 0 : index
    %20 = vector.load %arg8[%c0_18, %c0_19] : memref<128x256xf32, #tpu.memory_space<vmem>>, vector<128x256xf32>
    %c0_20 = arith.constant 0 : index
    %c0_21 = arith.constant 0 : index
    %21 = vector.load %arg9[%c0_20, %c0_21] : memref<128x128xf32, #tpu.memory_space<vmem>>, vector<128x128xf32>
    %c0_22 = arith.constant 0 : index
    %c0_23 = arith.constant 0 : index
    %22 = vector.load %arg13[%c0_22, %c0_23] : memref<8x128xf32, #tpu.memory_space<vmem>>, vector<8x128xf32>
    %c0_24 = arith.constant 0 : index
    %c0_25 = arith.constant 0 : index
    %23 = vector.load %arg11[%c0_24, %c0_25] : memref<32x384xf32, #tpu.memory_space<vmem>>, vector<8x256xf32>
    %c0_26 = arith.constant 0 : index
    %c256 = arith.constant 256 : index
    %24 = vector.load %arg11[%c0_26, %c256] : memref<32x384xf32, #tpu.memory_space<vmem>>, vector<8x128xf32>
    %c0_27 = arith.constant 0 : index
    %c0_28 = arith.constant 0 : index
    %25 = vector.load %arg12[%c0_27, %c0_28] : memref<32x128xf32, #tpu.memory_space<vmem>>, vector<8x128xf32>
    %26 = arith.mulf %25, %22 : vector<8x128xf32>
    %cst_29 = arith.constant dense<0.000000e+00> : vector<8x256xf32>
    %27 = tpu.matmul %26, %20, %cst_29 {dimension_numbers = #tpu.dot_dimension_numbers<[1], [0], [0], [1], [0, 0, 1, 1], [], []>} : vector<8x128xf32>, vector<128x256xf32>, vector<8x256xf32> -> vector<8x256xf32>
    %28 = arith.addf %23, %27 : vector<8x256xf32>
    %29 = arith.negf %28 : vector<8x256xf32>
    %30 = math.exp %29 : vector<8x256xf32>
    %cst_30 = arith.constant 1.000000e+00 : f32
    %31 = vector.broadcast %cst_30 : f32 to vector<8x256xf32>
    %32 = arith.addf %31, %30 : vector<8x256xf32>
    %33 = arith.divf %31, %32 : vector<8x256xf32>
    %34 = vector.extract_strided_slice %33 {offsets = [0, 0], sizes = [8, 128], strides = [1, 1]} : vector<8x256xf32> to vector<8x128xf32>
    %35 = vector.extract_strided_slice %33 {offsets = [0, 128], sizes = [8, 128], strides = [1, 1]} : vector<8x256xf32> to vector<8x128xf32>
    %36 = arith.mulf %35, %26 : vector<8x128xf32>
    %cst_31 = arith.constant dense<0.000000e+00> : vector<8x128xf32>
    %37 = tpu.matmul %36, %21, %cst_31 {dimension_numbers = #tpu.dot_dimension_numbers<[1], [0], [0], [1], [0, 0, 1, 1], [], []>} : vector<8x128xf32>, vector<128x128xf32>, vector<8x128xf32> -> vector<8x128xf32>
    %38 = arith.addf %24, %37 : vector<8x128xf32>
    %39 = math.tanh %38 : vector<8x128xf32>
    %40 = arith.mulf %34, %26 : vector<8x128xf32>
    %cst_32 = arith.constant 1.000000e+00 : f32
    %41 = vector.broadcast %cst_32 : f32 to vector<8x128xf32>
    %42 = arith.subf %41, %34 : vector<8x128xf32>
    %43 = arith.mulf %42, %39 : vector<8x128xf32>
    %44 = arith.addf %40, %43 : vector<8x128xf32>
    %c0_33 = arith.constant 0 : index
    %c0_34 = arith.constant 0 : index
    %45 = vector.load %arg10[%c0_33, %c0_34] : memref<32x128xf32, #tpu.memory_space<vmem>>, vector<8x128xf32>
    tpu.vector_store %arg10[%c0_33, %c0_34], %44 {strides = array<i32>} : memref<32x128xf32, #tpu.memory_space<vmem>>, vector<8x128xf32>,
    %c8 = arith.constant 8 : index
    %c0_35 = arith.constant 0 : index
    %46 = vector.load %arg11[%c8, %c0_35] : memref<32x384xf32, #tpu.memory_space<vmem>>, vector<8x256xf32>
    %c8_36 = arith.constant 8 : index
    %c256_37 = arith.constant 256 : index
    %47 = vector.load %arg11[%c8_36, %c256_37] : memref<32x384xf32, #tpu.memory_space<vmem>>, vector<8x128xf32>
    %c8_38 = arith.constant 8 : index
    %c0_39 = arith.constant 0 : index
    %48 = vector.load %arg12[%c8_38, %c0_39] : memref<32x128xf32, #tpu.memory_space<vmem>>, vector<8x128xf32>
    %49 = arith.mulf %48, %44 : vector<8x128xf32>
    %cst_40 = arith.constant dense<0.000000e+00> : vector<8x256xf32>
    %50 = tpu.matmul %49, %20, %cst_40 {dimension_numbers = #tpu.dot_dimension_numbers<[1], [0], [0], [1], [0, 0, 1, 1], [], []>} : vector<8x128xf32>, vector<128x256xf32>, vector<8x256xf32> -> vector<8x256xf32>
    %51 = arith.addf %46, %50 : vector<8x256xf32>
    %52 = arith.negf %51 : vector<8x256xf32>
    %53 = math.exp %52 : vector<8x256xf32>
    %cst_41 = arith.constant 1.000000e+00 : f32
    %54 = vector.broadcast %cst_41 : f32 to vector<8x256xf32>
    %55 = arith.addf %54, %53 : vector<8x256xf32>
    %56 = arith.divf %54, %55 : vector<8x256xf32>
    %57 = vector.extract_strided_slice %56 {offsets = [0, 0], sizes = [8, 128], strides = [1, 1]} : vector<8x256xf32> to vector<8x128xf32>
    %58 = vector.extract_strided_slice %56 {offsets = [0, 128], sizes = [8, 128], strides = [1, 1]} : vector<8x256xf32> to vector<8x128xf32>
    %59 = arith.mulf %58, %49 : vector<8x128xf32>
    %cst_42 = arith.constant dense<0.000000e+00> : vector<8x128xf32>
    %60 = tpu.matmul %59, %21, %cst_42 {dimension_numbers = #tpu.dot_dimension_numbers<[1], [0], [0], [1], [0, 0, 1, 1], [], []>} : vector<8x128xf32>, vector<128x128xf32>, vector<8x128xf32> -> vector<8x128xf32>
    %61 = arith.addf %47, %60 : vector<8x128xf32>
    %62 = math.tanh %61 : vector<8x128xf32>
    %63 = arith.mulf %57, %49 : vector<8x128xf32>
    %cst_43 = arith.constant 1.000000e+00 : f32
    %64 = vector.broadcast %cst_43 : f32 to vector<8x128xf32>
    %65 = arith.subf %64, %57 : vector<8x128xf32>
    %66 = arith.mulf %65, %62 : vector<8x128xf32>
    %67 = arith.addf %63, %66 : vector<8x128xf32>
    %c8_44 = arith.constant 8 : index
    %c0_45 = arith.constant 0 : index
    %68 = vector.load %arg10[%c8_44, %c0_45] : memref<32x128xf32, #tpu.memory_space<vmem>>, vector<8x128xf32>
    tpu.vector_store %arg10[%c8_44, %c0_45], %67 {strides = array<i32>} : memref<32x128xf32, #tpu.memory_space<vmem>>, vector<8x128xf32>,
    %c16 = arith.constant 16 : index
    %c0_46 = arith.constant 0 : index
    %69 = vector.load %arg11[%c16, %c0_46] : memref<32x384xf32, #tpu.memory_space<vmem>>, vector<8x256xf32>
    %c16_47 = arith.constant 16 : index
    %c256_48 = arith.constant 256 : index
    %70 = vector.load %arg11[%c16_47, %c256_48] : memref<32x384xf32, #tpu.memory_space<vmem>>, vector<8x128xf32>
    %c16_49 = arith.constant 16 : index
    %c0_50 = arith.constant 0 : index
    %71 = vector.load %arg12[%c16_49, %c0_50] : memref<32x128xf32, #tpu.memory_space<vmem>>, vector<8x128xf32>
    %72 = arith.mulf %71, %67 : vector<8x128xf32>
    %cst_51 = arith.constant dense<0.000000e+00> : vector<8x256xf32>
    %73 = tpu.matmul %72, %20, %cst_51 {dimension_numbers = #tpu.dot_dimension_numbers<[1], [0], [0], [1], [0, 0, 1, 1], [], []>} : vector<8x128xf32>, vector<128x256xf32>, vector<8x256xf32> -> vector<8x256xf32>
    %74 = arith.addf %69, %73 : vector<8x256xf32>
    %75 = arith.negf %74 : vector<8x256xf32>
    %76 = math.exp %75 : vector<8x256xf32>
    %cst_52 = arith.constant 1.000000e+00 : f32
    %77 = vector.broadcast %cst_52 : f32 to vector<8x256xf32>
    %78 = arith.addf %77, %76 : vector<8x256xf32>
    %79 = arith.divf %77, %78 : vector<8x256xf32>
    %80 = vector.extract_strided_slice %79 {offsets = [0, 0], sizes = [8, 128], strides = [1, 1]} : vector<8x256xf32> to vector<8x128xf32>
    %81 = vector.extract_strided_slice %79 {offsets = [0, 128], sizes = [8, 128], strides = [1, 1]} : vector<8x256xf32> to vector<8x128xf32>
    %82 = arith.mulf %81, %72 : vector<8x128xf32>
    %cst_53 = arith.constant dense<0.000000e+00> : vector<8x128xf32>
    %83 = tpu.matmul %82, %21, %cst_53 {dimension_numbers = #tpu.dot_dimension_numbers<[1], [0], [0], [1], [0, 0, 1, 1], [], []>} : vector<8x128xf32>, vector<128x128xf32>, vector<8x128xf32> -> vector<8x128xf32>
    %84 = arith.addf %70, %83 : vector<8x128xf32>
    %85 = math.tanh %84 : vector<8x128xf32>
    %86 = arith.mulf %80, %72 : vector<8x128xf32>
    %cst_54 = arith.constant 1.000000e+00 : f32
    %87 = vector.broadcast %cst_54 : f32 to vector<8x128xf32>
    %88 = arith.subf %87, %80 : vector<8x128xf32>
    %89 = arith.mulf %88, %85 : vector<8x128xf32>
    %90 = arith.addf %86, %89 : vector<8x128xf32>
    %c16_55 = arith.constant 16 : index
    %c0_56 = arith.constant 0 : index
    %91 = vector.load %arg10[%c16_55, %c0_56] : memref<32x128xf32, #tpu.memory_space<vmem>>, vector<8x128xf32>
    tpu.vector_store %arg10[%c16_55, %c0_56], %90 {strides = array<i32>} : memref<32x128xf32, #tpu.memory_space<vmem>>, vector<8x128xf32>,
    %c24 = arith.constant 24 : index
    %c0_57 = arith.constant 0 : index
    %92 = vector.load %arg11[%c24, %c0_57] : memref<32x384xf32, #tpu.memory_space<vmem>>, vector<8x256xf32>
    %c24_58 = arith.constant 24 : index
    %c256_59 = arith.constant 256 : index
    %93 = vector.load %arg11[%c24_58, %c256_59] : memref<32x384xf32, #tpu.memory_space<vmem>>, vector<8x128xf32>
    %c24_60 = arith.constant 24 : index
    %c0_61 = arith.constant 0 : index
    %94 = vector.load %arg12[%c24_60, %c0_61] : memref<32x128xf32, #tpu.memory_space<vmem>>, vector<8x128xf32>
    %95 = arith.mulf %94, %90 : vector<8x128xf32>
    %cst_62 = arith.constant dense<0.000000e+00> : vector<8x256xf32>
    %96 = tpu.matmul %95, %20, %cst_62 {dimension_numbers = #tpu.dot_dimension_numbers<[1], [0], [0], [1], [0, 0, 1, 1], [], []>} : vector<8x128xf32>, vector<128x256xf32>, vector<8x256xf32> -> vector<8x256xf32>
    %97 = arith.addf %92, %96 : vector<8x256xf32>
    %98 = arith.negf %97 : vector<8x256xf32>
    %99 = math.exp %98 : vector<8x256xf32>
    %cst_63 = arith.constant 1.000000e+00 : f32
    %100 = vector.broadcast %cst_63 : f32 to vector<8x256xf32>
    %101 = arith.addf %100, %99 : vector<8x256xf32>
    %102 = arith.divf %100, %101 : vector<8x256xf32>
    %103 = vector.extract_strided_slice %102 {offsets = [0, 0], sizes = [8, 128], strides = [1, 1]} : vector<8x256xf32> to vector<8x128xf32>
    %104 = vector.extract_strided_slice %102 {offsets = [0, 128], sizes = [8, 128], strides = [1, 1]} : vector<8x256xf32> to vector<8x128xf32>
    %105 = arith.mulf %104, %95 : vector<8x128xf32>
    %cst_64 = arith.constant dense<0.000000e+00> : vector<8x128xf32>
    %106 = tpu.matmul %105, %21, %cst_64 {dimension_numbers = #tpu.dot_dimension_numbers<[1], [0], [0], [1], [0, 0, 1, 1], [], []>} : vector<8x128xf32>, vector<128x128xf32>, vector<8x128xf32> -> vector<8x128xf32>
    %107 = arith.addf %93, %106 : vector<8x128xf32>
    %108 = math.tanh %107 : vector<8x128xf32>
    %109 = arith.mulf %103, %95 : vector<8x128xf32>
    %cst_65 = arith.constant 1.000000e+00 : f32
    %110 = vector.broadcast %cst_65 : f32 to vector<8x128xf32>
    %111 = arith.subf %110, %103 : vector<8x128xf32>
    %112 = arith.mulf %111, %108 : vector<8x128xf32>
    %113 = arith.addf %109, %112 : vector<8x128xf32>
    %c24_66 = arith.constant 24 : index
    %c0_67 = arith.constant 0 : index
    %114 = vector.load %arg10[%c24_66, %c0_67] : memref<32x128xf32, #tpu.memory_space<vmem>>, vector<8x128xf32>
    tpu.vector_store %arg10[%c24_66, %c0_67], %113 {strides = array<i32>} : memref<32x128xf32, #tpu.memory_space<vmem>>, vector<8x128xf32>,
    %c0_68 = arith.constant 0 : index
    %c0_69 = arith.constant 0 : index
    %115 = vector.load %arg13[%c0_68, %c0_69] : memref<8x128xf32, #tpu.memory_space<vmem>>, vector<8x128xf32>
    tpu.vector_store %arg13[%c0_68, %c0_69], %113 {strides = array<i32>} : memref<8x128xf32, #tpu.memory_space<vmem>>, vector<8x128xf32>,
    return
  }
  func.func @transform_0(%arg0: i32) -> (i32, i32) {
    %c0_i32 = arith.constant 0 : i32
    %c0_i32_0 = arith.constant 0 : i32
    return %arg0, %c0_i32 : i32, i32
  }
  func.func @transform_1(%arg0: i32) -> (i32, i32) {
    %c0_i32 = arith.constant 0 : i32
    %c0_i32_0 = arith.constant 0 : i32
    return %arg0, %c0_i32 : i32, i32
  }
  func.func @transform_2(%arg0: i32) -> (i32, i32) {
    %c0_i32 = arith.constant 0 : i32
    %c0_i32_0 = arith.constant 0 : i32
    %c0_i32_1 = arith.constant 0 : i32
    return %c0_i32, %c0_i32_0 : i32, i32
  }
  func.func @transform_3(%arg0: i32) -> (i32, i32) {
    %c0_i32 = arith.constant 0 : i32
    %c0_i32_0 = arith.constant 0 : i32
    %c0_i32_1 = arith.constant 0 : i32
    return %c0_i32, %c0_i32_0 : i32, i32
  }
  func.func @transform_4(%arg0: i32) -> (i32, i32) {
    %c0_i32 = arith.constant 0 : i32
    %c0_i32_0 = arith.constant 0 : i32
    %c0_i32_1 = arith.constant 0 : i32
    return %c0_i32, %c0_i32_0 : i32, i32
  }
  func.func @transform_5(%arg0: i32) -> (i32, i32) {
    %c0_i32 = arith.constant 0 : i32
    %c0_i32_0 = arith.constant 0 : i32
    %c0_i32_1 = arith.constant 0 : i32
    return %c0_i32, %c0_i32_0 : i32, i32
  }
  func.func @transform_6(%arg0: i32) -> (i32, i32) {
    %c0_i32 = arith.constant 0 : i32
    %c0_i32_0 = arith.constant 0 : i32
    %c0_i32_1 = arith.constant 0 : i32
    return %c0_i32, %c0_i32_0 : i32, i32
  }
  func.func @transform_7(%arg0: i32) -> (i32, i32) {
    %c0_i32 = arith.constant 0 : i32
    %c0_i32_0 = arith.constant 0 : i32
    %c0_i32_1 = arith.constant 0 : i32
    return %c0_i32, %c0_i32_0 : i32, i32
  }
  func.func @transform_8(%arg0: i32) -> (i32, i32) {
    %c0_i32 = arith.constant 0 : i32
    %c0_i32_0 = arith.constant 0 : i32
    %c0_i32_1 = arith.constant 0 : i32
    return %c0_i32, %c0_i32_0 : i32, i32
  }
  func.func @transform_9(%arg0: i32) -> (i32, i32) {
    %c0_i32 = arith.constant 0 : i32
    %c0_i32_0 = arith.constant 0 : i32
    return %arg0, %c0_i32 : i32, i32
  }
}

</mosaic_0001>

<llo_original>
// kernel: tpu_custom_call.1
$region0: #{tpu_custom_call.1}
  #allocation0 [shape = 'u32[]', space=smem, size = 0x4, offset = 0x4, fixed_abs, tag = 'smem constant byte address 0x4 - core index']
  #allocation1 [shape = 'u32[72,128]{1,0:T(1,128)}', space=vmem, size = 0x9000, scoped, tag = 'internal scratch']
  #allocation2 [shape = 'f32[32,384]{1,0:T(8,128)}', space=vmem, size = 0xc000, scoped, tag = 'scratch operand']
  #allocation3 [shape = 'f32[32,128]{1,0:T(8,128)}', space=vmem, size = 0x4000, scoped, tag = 'scratch operand']
  #allocation4 [shape = 'f32[8,128]{1,0:T(8,128)}', space=vmem, size = 0x1000, scoped, tag = 'scratch operand']
  %s0 = inlined_call_operand.vmem [shape: f32[64,16], index: 0, kind: input, shape index: {}]
  %s1 = inlined_call_operand.vmem [shape: f32[64,16], index: 1, kind: input, shape index: {}]
  %s2 = inlined_call_operand.hbm [shape: f32[8,128], index: 2, kind: input, shape index: {}]
  %s3 = inlined_call_operand.hbm [shape: f32[16,384], index: 3, kind: input, shape index: {}]
  %s4 = inlined_call_operand.vmem [shape: f32[1,384], index: 4, kind: input, shape index: {}]
  %s5 = inlined_call_operand.vmem [shape: f32[16,128], index: 5, kind: input, shape index: {}]
  %s6 = inlined_call_operand.vmem [shape: f32[1,128], index: 6, kind: input, shape index: {}]
  %s7 = inlined_call_operand.hbm [shape: f32[128,256], index: 7, kind: input, shape index: {}]
  %s8 = inlined_call_operand.vmem [shape: f32[128,128], index: 8, kind: input, shape index: {}]
  %s9 = inlined_call_operand.hbm [shape: f32[64,128], index: 9, kind: output, shape index: {}]
  %s10 = sld [smem:[#allocation0]]
  $region85: #{tpu_custom_call.1} parent=0
    _
  %s12 = ssub.s32 1, %s10
  %s13 = scalar_select 0, %s12, %s10
  $region1: #{tpu_custom_call.1} parent=0
    #allocation5 [shape = 'u8[4096]{0}', space=vmem, size = 0x1000, scoped, tag = 'input window, operand 2, single buffered']
    #allocation6 [shape = 's32[2]{0}', space=sflag, size = 0x8, scoped, tag = 'scoped memory for tpu_custom_call.1']
    #allocation7 [shape = 's32[2]{0}', space=sflag, size = 0x8, scoped, tag = 'scoped memory for tpu_custom_call.1']
    #allocation8 [shape = 'u8[24576]{0}', space=vmem, size = 0x6000, scoped, tag = 'input window, operand 3, single buffered']
    #allocation9 [shape = 's32[1]{0}', space=sflag, size = 0x4, scoped, tag = 'scoped memory for tpu_custom_call.1']
    #allocation10 [shape = 'u8[131072]{0}', space=vmem, size = 0x20000, scoped, tag = 'input window, operand 7, single buffered']
    #allocation11 [shape = 'u8[32768]{0}', space=vmem, size = 0x8000, scoped, tag = 'output window, operand 0']
    %14 = vsyncpa [#allocation6], 0
    %15 = vsyncpa [#allocation9], 0
    %16 = vsyncpa [#allocation7], 0
    %s17 = scalar_lea.sflag [#allocation7], 1
    %18 = vsyncpa %s17, 0
    loop: start=0, step=1, limit=4
    $region2: #{tpu_custom_call.1} parent=1 // loop_pre_header
      _
    $region3: #{tpu_custom_call.1} parent=1 // loop_header
      %s20 = sphi 0, %s24
      %p21 = scmp.ge.s32.totalorder %s20, 4
      %s30 = sphi 0, %s32
      %s33 = sphi 0, %s30
      %s34 = sphi 0, %s33
      %s50 = sphi 0, %s34
      %s56 = sphi 0, %s58
      %s59 = sphi 0, %s56
      %s60 = sphi 0, %s59
      %s76 = sphi 0, %s60
      %s80 = sphi 0, %s80
      %s82 = sphi 0, %s80
      %s83 = sphi 0, %s82
      %s97 = sphi 0, %s83
      %s101 = sphi 0, %s101
      %s103 = sphi 0, %s101
      %s104 = sphi 0, %s103
      %s118 = sphi 0, %s104
      %s122 = sphi 0, %s122
      %s124 = sphi 0, %s122
      %s125 = sphi 0, %s124
      %s139 = sphi 0, %s125
      %s143 = sphi 0, %s143
      %s145 = sphi 0, %s143
      %s146 = sphi 0, %s145
      %s160 = sphi 0, %s146
      %s164 = sphi 0, %s164
      %s166 = sphi 0, %s164
      %s167 = sphi 0, %s166
      %s181 = sphi 0, %s167
      %s185 = sphi 0, %s185
      %s187 = sphi 0, %s185
      %s188 = sphi 0, %s187
      %s202 = sphi 0, %s188
      %s206 = sphi 0, %s206
      %s208 = sphi 0, %s206
      %s209 = sphi 0, %s208
      %s223 = sphi 0, %s209
      %s229 = sphi 0, %s231
      %s232 = sphi 0, %s229
      %s233 = sphi 0, %s232
      %s249 = sphi 0, %s233
    $region4: #{tpu_custom_call.1} parent=1 // loop_header_branch
      %23 = sbr.rel (%p21) target = $region8
    $region5: #{tpu_custom_call.1} parent=1 // loop_body
      %s25 = ssub.s32 %s20, 1
      %s26 = ssub.s32 %s20, 2
      %s27 = sadd.s32 %s20, 1
      %s28 = ssub.s32 %s20, %s27
      %p29 = scmp.eq.s32.totalorder %s28, 0
      %s31 = sadd.s32 %s30, 1
      %s32 = scalar_select %p29, %s30, %s31
      %p35 = pneg %p29
      %p36 = scmp.eq.s32.totalorder %s20, 1
      %p37 = por %p35, %p36
      %p38 = scmp.ne.s32.totalorder %s30, %s33
      %p39 = scmp.eq.s32.totalorder %s20, 0
      %p40 = por %p38, %p39
      %p41 = scmp.ne.s32.totalorder %s30, %s33
      %p42 = scmp.eq.s32.totalorder %s25, 1
      %p43 = por %p41, %p42
      %p44 = scmp.ne.s32.totalorder %s33, %s34
      %p45 = scmp.eq.s32.totalorder %s25, 0
      %p46 = por %p44, %p45
      %p47 = scmp.ne.s32.totalorder %s33, %s34
      %p48 = scmp.eq.s32.totalorder %s26, 1
      %p49 = por %p47, %p48
      %p51 = scmp.ne.s32.totalorder %s34, %s50
      %p52 = scmp.eq.s32.totalorder %s26, 0
      %p53 = por %p51, %p52
      %s54 = ssub.s32 %s20, %s27
      %p55 = scmp.eq.s32.totalorder %s54, 0
      %s57 = sadd.s32 %s56, 1
      %s58 = scalar_select %p55, %s56, %s57
      %p61 = pneg %p55
      %p62 = scmp.eq.s32.totalorder %s20, 1
      %p63 = por %p61, %p62
      %p64 = scmp.ne.s32.totalorder %s56, %s59
      %p65 = scmp.eq.s32.totalorder %s20, 0
      %p66 = por %p64, %p65
      %p67 = scmp.ne.s32.totalorder %s56, %s59
      %p68 = scmp.eq.s32.totalorder %s25, 1
      %p69 = por %p67, %p68
      %p70 = scmp.ne.s32.totalorder %s59, %s60
      %p71 = scmp.eq.s32.totalorder %s25, 0
      %p72 = por %p70, %p71
      %p73 = scmp.ne.s32.totalorder %s59, %s60
      %p74 = scmp.eq.s32.totalorder %s26, 1
      %p75 = por %p73, %p74
      %p77 = scmp.ne.s32.totalorder %s60, %s76
      %p78 = scmp.eq.s32.totalorder %s26, 0
      %p79 = por %p77, %p78
      %s81 = sadd.s32 %s80, 1
      %p84 = scmp.eq.s32.totalorder %s20, 1
      %p85 = scmp.ne.s32.totalorder %s80, %s82
      %p86 = scmp.eq.s32.totalorder %s20, 0
      %p87 = por %p85, %p86
      %p88 = scmp.ne.s32.totalorder %s80, %s82
      %p89 = scmp.eq.s32.totalorder %s25, 1
      %p90 = por %p88, %p89
      %p91 = scmp.ne.s32.totalorder %s82, %s83
      %p92 = scmp.eq.s32.totalorder %s25, 0
      %p93 = por %p91, %p92
      %p94 = scmp.ne.s32.totalorder %s82, %s83
      %p95 = scmp.eq.s32.totalorder %s26, 1
      %p96 = por %p94, %p95
      %p98 = scmp.ne.s32.totalorder %s83, %s97
      %p99 = scmp.eq.s32.totalorder %s26, 0
      %p100 = por %p98, %p99
      %s102 = sadd.s32 %s101, 1
      %p105 = scmp.eq.s32.totalorder %s20, 1
      %p106 = scmp.ne.s32.totalorder %s101, %s103
      %p107 = scmp.eq.s32.totalorder %s20, 0
      %p108 = por %p106, %p107
      %p109 = scmp.ne.s32.totalorder %s101, %s103
      %p110 = scmp.eq.s32.totalorder %s25, 1
      %p111 = por %p109, %p110
      %p112 = scmp.ne.s32.totalorder %s103, %s104
      %p113 = scmp.eq.s32.totalorder %s25, 0
      %p114 = por %p112, %p113
      %p115 = scmp.ne.s32.totalorder %s103, %s104
      %p116 = scmp.eq.s32.totalorder %s26, 1
      %p117 = por %p115, %p116
      %p119 = scmp.ne.s32.totalorder %s104, %s118
      %p120 = scmp.eq.s32.totalorder %s26, 0
      %p121 = por %p119, %p120
      %s123 = sadd.s32 %s122, 1
      %p126 = scmp.eq.s32.totalorder %s20, 1
      %p127 = scmp.ne.s32.totalorder %s122, %s124
      %p128 = scmp.eq.s32.totalorder %s20, 0
      %p129 = por %p127, %p128
      %p130 = scmp.ne.s32.totalorder %s122, %s124
      %p131 = scmp.eq.s32.totalorder %s25, 1
      %p132 = por %p130, %p131
      %p133 = scmp.ne.s32.totalorder %s124, %s125
      %p134 = scmp.eq.s32.totalorder %s25, 0
      %p135 = por %p133, %p134
      %p136 = scmp.ne.s32.totalorder %s124, %s125
      %p137 = scmp.eq.s32.totalorder %s26, 1
      %p138 = por %p136, %p137
      %p140 = scmp.ne.s32.totalorder %s125, %s139
      %p141 = scmp.eq.s32.totalorder %s26, 0
      %p142 = por %p140, %p141
      %s144 = sadd.s32 %s143, 1
      %p147 = scmp.eq.s32.totalorder %s20, 1
      %p148 = scmp.ne.s32.totalorder %s143, %s145
      %p149 = scmp.eq.s32.totalorder %s20, 0
      %p150 = por %p148, %p149
      %p151 = scmp.ne.s32.totalorder %s143, %s145
      %p152 = scmp.eq.s32.totalorder %s25, 1
      %p153 = por %p151, %p152
      %p154 = scmp.ne.s32.totalorder %s145, %s146
      %p155 = scmp.eq.s32.totalorder %s25, 0
      %p156 = por %p154, %p155
      %p157 = scmp.ne.s32.totalorder %s145, %s146
      %p158 = scmp.eq.s32.totalorder %s26, 1
      %p159 = por %p157, %p158
      %p161 = scmp.ne.s32.totalorder %s146, %s160
      %p162 = scmp.eq.s32.totalorder %s26, 0
      %p163 = por %p161, %p162
      %s165 = sadd.s32 %s164, 1
      %p168 = scmp.eq.s32.totalorder %s20, 1
      %p169 = scmp.ne.s32.totalorder %s164, %s166
      %p170 = scmp.eq.s32.totalorder %s20, 0
      %p171 = por %p169, %p170
      %p172 = scmp.ne.s32.totalorder %s164, %s166
      %p173 = scmp.eq.s32.totalorder %s25, 1
      %p174 = por %p172, %p173
      %p175 = scmp.ne.s32.totalorder %s166, %s167
      %p176 = scmp.eq.s32.totalorder %s25, 0
      %p177 = por %p175, %p176
      %p178 = scmp.ne.s32.totalorder %s166, %s167
      %p179 = scmp.eq.s32.totalorder %s26, 1
      %p180 = por %p178, %p179
      %p182 = scmp.ne.s32.totalorder %s167, %s181
      %p183 = scmp.eq.s32.totalorder %s26, 0
      %p184 = por %p182, %p183
      %s186 = sadd.s32 %s185, 1
      %p189 = scmp.eq.s32.totalorder %s20, 1
      %p190 = scmp.ne.s32.totalorder %s185, %s187
      %p191 = scmp.eq.s32.totalorder %s20, 0
      %p192 = por %p190, %p191
      %p193 = scmp.ne.s32.totalorder %s185, %s187
      %p194 = scmp.eq.s32.totalorder %s25, 1
      %p195 = por %p193, %p194
      %p196 = scmp.ne.s32.totalorder %s187, %s188
      %p197 = scmp.eq.s32.totalorder %s25, 0
      %p198 = por %p196, %p197
      %p199 = scmp.ne.s32.totalorder %s187, %s188
      %p200 = scmp.eq.s32.totalorder %s26, 1
      %p201 = por %p199, %p200
      %p203 = scmp.ne.s32.totalorder %s188, %s202
      %p204 = scmp.eq.s32.totalorder %s26, 0
      %p205 = por %p203, %p204
      %s207 = sadd.s32 %s206, 1
      %p210 = scmp.eq.s32.totalorder %s20, 1
      %p211 = scmp.ne.s32.totalorder %s206, %s208
      %p212 = scmp.eq.s32.totalorder %s20, 0
      %p213 = por %p211, %p212
      %p214 = scmp.ne.s32.totalorder %s206, %s208
      %p215 = scmp.eq.s32.totalorder %s25, 1
      %p216 = por %p214, %p215
      %p217 = scmp.ne.s32.totalorder %s208, %s209
      %p218 = scmp.eq.s32.totalorder %s25, 0
      %p219 = por %p217, %p218
      %p220 = scmp.ne.s32.totalorder %s208, %s209
      %p221 = scmp.eq.s32.totalorder %s26, 1
      %p222 = por %p220, %p221
      %p224 = scmp.ne.s32.totalorder %s209, %s223
      %p225 = scmp.eq.s32.totalorder %s26, 0
      %p226 = por %p224, %p225
      %s227 = ssub.s32 %s20, %s27
      %p228 = scmp.eq.s32.totalorder %s227, 0
      %s230 = sadd.s32 %s229, 1
      %s231 = scalar_select %p228, %s229, %s230
      %p234 = pneg %p228
      %p235 = scmp.eq.s32.totalorder %s20, 1
      %p236 = por %p234, %p235
      %p237 = scmp.ne.s32.totalorder %s229, %s232
      %p238 = scmp.eq.s32.totalorder %s20, 0
      %p239 = por %p237, %p238
      %p240 = scmp.ne.s32.totalorder %s229, %s232
      %p241 = scmp.eq.s32.totalorder %s25, 1
      %p242 = por %p240, %p241
      %p243 = scmp.ne.s32.totalorder %s232, %s233
      %p244 = scmp.eq.s32.totalorder %s25, 0
      %p245 = por %p243, %p244
      %p246 = scmp.ne.s32.totalorder %s232, %s233
      %p247 = scmp.eq.s32.totalorder %s26, 1
      %p248 = por %p246, %p247
      %p250 = scmp.ne.s32.totalorder %s233, %s249
      %p251 = scmp.eq.s32.totalorder %s26, 0
      %p252 = por %p250, %p251
      %p253 = scmp.le.s32.totalorder 1, %s20
      %p254 = scmp.lt.s32.totalorder %s20, 3
      %p255 = pnand %p253, %p254
      %p256 = pneg %p255
      // Predicated region
      $region9: #{tpu_custom_call.1} parent=5 // pred_check
        _
      $region10: #{tpu_custom_call.1} parent=5 // pred_check_branch
        %258 = sbr.rel (%p255) target = $region12
      $region11: #{tpu_custom_call.1} parent=5 // pred_region
        %s259 = ssub.s32 %s20, 1
        // Predicated region
        $region13: #{tpu_custom_call.1} parent=11 // pred_check
          %p260 = pneg %p93
        $region14: #{tpu_custom_call.1} parent=11 // pred_check_branch
          %262 = sbr.rel (%p260) target = $region16
        $region15: #{tpu_custom_call.1} parent=11 // pred_region
          %264 = vsyncadd [#allocation6], 0
          %s266 = sshll.u32 %s2, 4
          %s267 = int_to_ptr.hbm [resolvable:$true] %s266
          %s268 = sshll.u32 [#allocation5], 4
          %s269 = int_to_ptr.vmem [resolvable:$true] %s268
          %271 = dma.hbm_to_vmem [thread:$0]  %s267, 128, %s269, [#allocation6]
        $region16: #{tpu_custom_call.1} parent=11 // pred_fallthru
          _
        // Predicated region
        $region17: #{tpu_custom_call.1} parent=11 // pred_check
          %p272 = pneg %p114
        $region18: #{tpu_custom_call.1} parent=11 // pred_check_branch
          %274 = sbr.rel (%p272) target = $region20
        $region19: #{tpu_custom_call.1} parent=11 // pred_region
          %276 = vsyncadd [#allocation9], 0
          %s277 = sshll.u32 %s3, 4
          %s278 = int_to_ptr.hbm [resolvable:$true] %s277
          %s279 = sshll.u32 [#allocation8], 4
          %s280 = int_to_ptr.vmem [resolvable:$true] %s279
          %285 = dma.hbm_to_vmem [thread:$0]  %s278, 768, %s280, [#allocation9], 384, 384, 24
        $region20: #{tpu_custom_call.1} parent=11 // pred_fallthru
          _
        // Predicated region
        $region21: #{tpu_custom_call.1} parent=11 // pred_check
          %p286 = pneg %p135
        $region22: #{tpu_custom_call.1} parent=11 // pred_check_branch
          %288 = sbr.rel (%p286) target = $region24
        $region23: #{tpu_custom_call.1} parent=11 // pred_region
          _
        $region24: #{tpu_custom_call.1} parent=11 // pred_fallthru
          _
        // Predicated region
        $region25: #{tpu_custom_call.1} parent=11 // pred_check
          %p289 = pneg %p156
        $region26: #{tpu_custom_call.1} parent=11 // pred_check_branch
          %291 = sbr.rel (%p289) target = $region28
        $region27: #{tpu_custom_call.1} parent=11 // pred_region
          _
        $region28: #{tpu_custom_call.1} parent=11 // pred_fallthru
          _
        // Predicated region
        $region29: #{tpu_custom_call.1} parent=11 // pred_check
          %p292 = pneg %p177
        $region30: #{tpu_custom_call.1} parent=11 // pred_check_branch
          %294 = sbr.rel (%p292) target = $region32
        $region31: #{tpu_custom_call.1} parent=11 // pred_region
          _
        $region32: #{tpu_custom_call.1} parent=11 // pred_fallthru
          _
        // Predicated region
        $region33: #{tpu_custom_call.1} parent=11 // pred_check
          %p295 = pneg %p198
        $region34: #{tpu_custom_call.1} parent=11 // pred_check_branch
          %297 = sbr.rel (%p295) target = $region36
        $region35: #{tpu_custom_call.1} parent=11 // pred_region
          %299 = vsyncadd [#allocation9], 0
          %s300 = sshll.u32 %s7, 4
          %s301 = int_to_ptr.hbm [resolvable:$true] %s300
          %s302 = sshll.u32 [#allocation10], 4
          %s303 = int_to_ptr.vmem [resolvable:$true] %s302
          %308 = dma.hbm_to_vmem [thread:$0]  %s301, 4096, %s303, [#allocation9], 256, 256, 16
        $region36: #{tpu_custom_call.1} parent=11 // pred_fallthru
          _
        // Predicated region
        $region37: #{tpu_custom_call.1} parent=11 // pred_check
          %p309 = pneg %p219
        $region38: #{tpu_custom_call.1} parent=11 // pred_check_branch
          %311 = sbr.rel (%p309) target = $region40
        $region39: #{tpu_custom_call.1} parent=11 // pred_region
          _
        $region40: #{tpu_custom_call.1} parent=11 // pred_fallthru
          _
      $region12: #{tpu_custom_call.1} parent=5 // pred_fallthru
        _
      %p312 = scmp.lt.s32.totalorder %s20, 2
      // Predicated region
      $region41: #{tpu_custom_call.1} parent=5 // pred_check
        %p313 = pneg %p312
      $region42: #{tpu_custom_call.1} parent=5 // pred_check_branch
        %315 = sbr.rel (%p313) target = $region44
      $region43: #{tpu_custom_call.1} parent=5 // pred_region
        // Predicated region
        $region45: #{tpu_custom_call.1} parent=43 // pred_check
          %p316 = pneg %p40
        $region46: #{tpu_custom_call.1} parent=43 // pred_check_branch
          %318 = sbr.rel (%p316) target = $region48
        $region47: #{tpu_custom_call.1} parent=43 // pred_region
          %s319 = smul.u32 4, %s20
          %p320 = scmp.lt.s32.totalorder %s319, 7
          %s321 = scalar_select %p320, %s319, 7
          %s322 = smul.addr %s321, 8
          %s323 = scalar_lea.vmem %s0, %s322
          %s324 = smul.u32 4, %s20
        $region48: #{tpu_custom_call.1} parent=43 // pred_fallthru
          _
        // Predicated region
        $region49: #{tpu_custom_call.1} parent=43 // pred_check
          %p325 = pneg %p66
        $region50: #{tpu_custom_call.1} parent=43 // pred_check_branch
          %327 = sbr.rel (%p325) target = $region52
        $region51: #{tpu_custom_call.1} parent=43 // pred_region
          %s328 = smul.u32 4, %s20
          %p329 = scmp.lt.s32.totalorder %s328, 7
          %s330 = scalar_select %p329, %s328, 7
          %s331 = smul.addr %s330, 8
          %s332 = scalar_lea.vmem %s1, %s331
          %s333 = smul.u32 4, %s20
        $region52: #{tpu_custom_call.1} parent=43 // pred_fallthru
          _
      $region44: #{tpu_custom_call.1} parent=5 // pred_fallthru
        _
      %p334 = scmp.le.s32.totalorder 1, %s20
      %p335 = scmp.lt.s32.totalorder %s20, 3
      %p336 = pnand %p334, %p335
      %p337 = pneg %p336
      // Predicated region
      $region53: #{tpu_custom_call.1} parent=5 // pred_check
        _
      $region54: #{tpu_custom_call.1} parent=5 // pred_check_branch
        %339 = sbr.rel (%p336) target = $region56
      $region55: #{tpu_custom_call.1} parent=5 // pred_region
        %s340 = ssub.s32 %s20, 1
        // Predicated region
        $region57: #{tpu_custom_call.1} parent=55 // pred_check
          %p341 = pneg %p93
        $region58: #{tpu_custom_call.1} parent=55 // pred_check_branch
          %343 = sbr.rel (%p341) target = $region60
        $region59: #{tpu_custom_call.1} parent=55 // pred_region
          %345 = dma.done [#allocation6], 128
        $region60: #{tpu_custom_call.1} parent=55 // pred_fallthru
          _
        // Predicated region
        $region61: #{tpu_custom_call.1} parent=55 // pred_check
          %p346 = pneg %p114
        $region62: #{tpu_custom_call.1} parent=55 // pred_check_branch
          %348 = sbr.rel (%p346) target = $region64
        $region63: #{tpu_custom_call.1} parent=55 // pred_region
          %350 = dma.done [#allocation9], 768
        $region64: #{tpu_custom_call.1} parent=55 // pred_fallthru
          _
        // Predicated region
        $region65: #{tpu_custom_call.1} parent=55 // pred_check
          %p351 = pneg %p198
        $region66: #{tpu_custom_call.1} parent=55 // pred_check_branch
          %353 = sbr.rel (%p351) target = $region68
        $region67: #{tpu_custom_call.1} parent=55 // pred_region
          %355 = dma.done [#allocation9], 4096
        $region68: #{tpu_custom_call.1} parent=55 // pred_fallthru
          _
        %s356 = smul.u32 4, %s25
        %p357 = scmp.lt.s32.totalorder %s356, 7
        %s358 = scalar_select %p357, %s356, 7
        %s359 = smul.addr %s358, 8
        %s360 = scalar_lea.vmem %s0, %s359
        %p361 = pneg %p46
        %p362 = pneg %p43
        %s363 = smul.u32 4, %s25
        %p364 = scmp.lt.s32.totalorder %s363, 7
        %s365 = scalar_select %p364, %s363, 7
        %s366 = smul.addr %s365, 8
        %s367 = scalar_lea.vmem %s1, %s366
        %p368 = pneg %p72
        %p369 = pneg %p69
        %p370 = pneg %p93
        %p371 = pneg %p90
        %p372 = pneg %p114
        %p373 = pneg %p111
        %p374 = pneg %p135
        %p375 = pneg %p132
        %p376 = pneg %p156
        %p377 = pneg %p153
        %p378 = pneg %p177
        %p379 = pneg %p174
        %p380 = pneg %p198
        %p381 = pneg %p195
        %p382 = pneg %p219
        %p383 = pneg %p216
        %p384 = pneg %p245
        %p385 = pneg %p242
        %s386 = sand.u32 %s232, 1
        %s387 = scalar_lea.sflag [#allocation7], %s386
        %s388 = sand.u32 %s232, 1
        %s389 = smul.addr %s388, 32
        %s390 = scalar_lea.vmem [#allocation11], %s389
        %s391 = smul.u32 4, %s25
        %p392 = scmp.lt.s32.totalorder %s391, 7
        %s393 = scalar_select %p392, %s391, 7
        %s394 = smul.addr %s393, 8
        %s395 = scalar_lea.vmem %s0, %s394
        %s396 = smul.u32 4, %s25
        %s397 = smul.u32 4, %s25
        %p398 = scmp.lt.s32.totalorder %s397, 7
        %s399 = scalar_select %p398, %s397, 7
        %s400 = smul.addr %s399, 8
        %s401 = scalar_lea.vmem %s1, %s400
        %s402 = smul.u32 4, %s25
        %s403 = smul.u32 4, %s25
        %v404 = vld [vmem:[%s395] sm:$0xff]
        %v405 = vld [vmem:[%s395 + $0x8] sm:$0xff]
        %v406 = vld [vmem:[%s395 + $0x10] sm:$0xff]
        %v407 = vld [vmem:[%s395 + $0x18] sm:$0xff]
        %v408 = vld [vmem:[#allocation8] sm:$0xff]
        %v409 = vld [vmem:[#allocation8 + $0x8] sm:$0xff]
        %v410 = vld [vmem:[#allocation8 + $0x10] sm:$0xff]
        %v411 = vld [vmem:[#allocation8 + $0x18] sm:$0xff]
        %v412 = vld [vmem:[#allocation8 + $0x20] sm:$0xff]
        %v413 = vld [vmem:[#allocation8 + $0x28] sm:$0xff]
        %v414 = vld [vmem:[%s4] sm:$0x7]
        %v416 = vperm.slane %v414, 0
        %v417 = vperm.slane %v414, 1
        %v418 = vperm.slane %v414, 2
        %vm422 = vcmask 130048
        %v424 = vsel %vm422, %v404, 0
        %v427 = vsel %vm422, %v405, 0
        %v430 = vsel %vm422, %v406, 0
        %v433 = vsel %vm422, %v407, 0
        %435 = vmatpush.msra.mxu0 0.0
        %436 = vmatpush.msra.mxu0 0.0
        %437 = vmatpush.msra.mxu0 0.0
        %438 = vmatpush.msra.mxu0 0.0
        %439 = vmatpush.msra.mxu0 0.0
        %440 = vmatpush.msra.mxu0 0.0
        %441 = vmatpush.msra.mxu0 0.0
        %442 = vmatpush.msra.mxu0 0.0
        %443 = vmatpush.msra.mxu0 0.0
        %444 = vmatpush.msra.mxu0 0.0
        %445 = vmatpush.msra.mxu0 0.0
        %446 = vmatpush.msra.mxu0 0.0
        %447 = vmatpush.msra.mxu0 0.0
        %448 = vmatpush.msra.mxu0 0.0
        %449 = vmatpush.msra.mxu0 %v411
        %450 = vmatpush.msra.mxu0 %v408
        %451 = vmatmul.f32.gmra.mxu0 %v424
        %v452 = vpop.f32.mrf.mxu0
        %v453 = vadd.f32 %v416, %v452
        %454 = vmatmul.f32.gmra.mxu0 %v427
        %v455 = vpop.f32.mrf.mxu0
        %v456 = vadd.f32 %v416, %v455
        %457 = vmatmul.f32.gmra.mxu0 %v430
        %v458 = vpop.f32.mrf.mxu0
        %v459 = vadd.f32 %v416, %v458
        %460 = vmatmul.f32.gmra.mxu0 %v433
        %v461 = vpop.f32.mrf.mxu0
        %v462 = vadd.f32 %v416, %v461
        %463 = vdwg.mxu0
        %464 = vmatpush.msra.mxu0 0.0
        %465 = vmatpush.msra.mxu0 0.0
        %466 = vmatpush.msra.mxu0 0.0
        %467 = vmatpush.msra.mxu0 0.0
        %468 = vmatpush.msra.mxu0 0.0
        %469 = vmatpush.msra.mxu0 0.0
        %470 = vmatpush.msra.mxu0 0.0
        %471 = vmatpush.msra.mxu0 0.0
        %472 = vmatpush.msra.mxu0 0.0
        %473 = vmatpush.msra.mxu0 0.0
        %474 = vmatpush.msra.mxu0 0.0
        %475 = vmatpush.msra.mxu0 0.0
        %476 = vmatpush.msra.mxu0 0.0
        %477 = vmatpush.msra.mxu0 0.0
        %478 = vmatpush.msra.mxu0 %v412
        %479 = vmatpush.msra.mxu0 %v409
        %480 = vmatmul.f32.gmra.mxu0 %v424
        %v481 = vpop.f32.mrf.mxu0
        %v482 = vadd.f32 %v417, %v481
        %483 = vmatmul.f32.gmra.mxu0 %v427
        %v484 = vpop.f32.mrf.mxu0
        %v485 = vadd.f32 %v417, %v484
        %486 = vmatmul.f32.gmra.mxu0 %v430
        %v487 = vpop.f32.mrf.mxu0
        %v488 = vadd.f32 %v417, %v487
        %489 = vmatmul.f32.gmra.mxu0 %v433
        %v490 = vpop.f32.mrf.mxu0
        %v491 = vadd.f32 %v417, %v490
        %492 = vdwg.mxu0
        %493 = vmatpush.msra.mxu0 0.0
        %494 = vmatpush.msra.mxu0 0.0
        %495 = vmatpush.msra.mxu0 0.0
        %496 = vmatpush.msra.mxu0 0.0
        %497 = vmatpush.msra.mxu0 0.0
        %498 = vmatpush.msra.mxu0 0.0
        %499 = vmatpush.msra.mxu0 0.0
        %500 = vmatpush.msra.mxu0 0.0
        %501 = vmatpush.msra.mxu0 0.0
        %502 = vmatpush.msra.mxu0 0.0
        %503 = vmatpush.msra.mxu0 0.0
        %504 = vmatpush.msra.mxu0 0.0
        %505 = vmatpush.msra.mxu0 0.0
        %506 = vmatpush.msra.mxu0 0.0
        %507 = vmatpush.msra.mxu0 %v413
        %508 = vmatpush.msra.mxu0 %v410
        %509 = vmatmul.f32.gmra.mxu0 %v424
        %v510 = vpop.f32.mrf.mxu0
        %v511 = vadd.f32 %v418, %v510
        %512 = vmatmul.f32.gmra.mxu0 %v427
        %v513 = vpop.f32.mrf.mxu0
        %v514 = vadd.f32 %v418, %v513
        %515 = vmatmul.f32.gmra.mxu0 %v430
        %v516 = vpop.f32.mrf.mxu0
        %v517 = vadd.f32 %v418, %v516
        %518 = vmatmul.f32.gmra.mxu0 %v433
        %v519 = vpop.f32.mrf.mxu0
        %v520 = vadd.f32 %v418, %v519
        %521 = vdwg.mxu0
        %522 = vst [vmem:[#allocation2] sm:$0xff] %v453
        %523 = vst [vmem:[#allocation2 + $0x8] sm:$0xff] %v482
        %524 = vst [vmem:[#allocation2 + $0x10] sm:$0xff] %v511
        %525 = vst [vmem:[#allocation2 + $0x18] sm:$0xff] %v456
        %526 = vst [vmem:[#allocation2 + $0x20] sm:$0xff] %v485
        %527 = vst [vmem:[#allocation2 + $0x28] sm:$0xff] %v514
        %528 = vst [vmem:[#allocation2 + $0x30] sm:$0xff] %v459
        %529 = vst [vmem:[#allocation2 + $0x38] sm:$0xff] %v488
        %530 = vst [vmem:[#allocation2 + $0x40] sm:$0xff] %v517
        %531 = vst [vmem:[#allocation2 + $0x48] sm:$0xff] %v462
        %532 = vst [vmem:[#allocation2 + $0x50] sm:$0xff] %v491
        %533 = vst [vmem:[#allocation2 + $0x58] sm:$0xff] %v520
        %v534 = vld [vmem:[%s401] sm:$0xff]
        %v535 = vld [vmem:[%s401 + $0x8] sm:$0xff]
        %v536 = vld [vmem:[%s401 + $0x10] sm:$0xff]
        %v537 = vld [vmem:[%s401 + $0x18] sm:$0xff]
        %v538 = vld [vmem:[%s5] sm:$0xff]
        %v539 = vld [vmem:[%s5 + $0x8] sm:$0xff]
        %v540 = vld [vmem:[%s6] sm:$0x1]
        %v542 = vperm.slane %v540, 0
        %v545 = vsel %vm422, %v534, 0
        %v548 = vsel %vm422, %v535, 0
        %v551 = vsel %vm422, %v536, 0
        %v554 = vsel %vm422, %v537, 0
        %556 = vmatpush.msra.mxu0 0.0
        %557 = vmatpush.msra.mxu0 0.0
        %558 = vmatpush.msra.mxu0 0.0
        %559 = vmatpush.msra.mxu0 0.0
        %560 = vmatpush.msra.mxu0 0.0
        %561 = vmatpush.msra.mxu0 0.0
        %562 = vmatpush.msra.mxu0 0.0
        %563 = vmatpush.msra.mxu0 0.0
        %564 = vmatpush.msra.mxu0 0.0
        %565 = vmatpush.msra.mxu0 0.0
        %566 = vmatpush.msra.mxu0 0.0
        %567 = vmatpush.msra.mxu0 0.0
        %568 = vmatpush.msra.mxu0 0.0
        %569 = vmatpush.msra.mxu0 0.0
        %570 = vmatpush.msra.mxu0 %v539
        %571 = vmatpush.msra.mxu0 %v538
        %572 = vmatmul.f32.gmra.mxu0 %v545
        %v573 = vpop.f32.mrf.mxu0
        %v574 = vadd.f32 %v542, %v573
        %575 = vmatmul.f32.gmra.mxu0 %v548
        %v576 = vpop.f32.mrf.mxu0
        %v577 = vadd.f32 %v542, %v576
        %578 = vmatmul.f32.gmra.mxu0 %v551
        %v579 = vpop.f32.mrf.mxu0
        %v580 = vadd.f32 %v542, %v579
        %581 = vmatmul.f32.gmra.mxu0 %v554
        %v582 = vpop.f32.mrf.mxu0
        %v583 = vadd.f32 %v542, %v582
        %584 = vdwg.mxu0
        %v585 = vmin.f32 %v574, 0.0
        %v586 = vmin.f32 %v577, 0.0
        %v587 = vmin.f32 %v580, 0.0
        %v588 = vmin.f32 %v583, 0.0
        %v589 = vmul.f32 %v585, 1.442695
        %v590 = vpow.pop %v589
        %v591 = vmul.f32 %v586, 1.442695
        %v592 = vpow.pop %v591
        %v593 = vmul.f32 %v587, 1.442695
        %v594 = vpow.pop %v593
        %v595 = vmul.f32 %v588, 1.442695
        %v596 = vpow.pop %v595
        %597 = vst [vmem:[#allocation3] sm:$0xff] %v590
        %598 = vst [vmem:[#allocation3 + $0x8] sm:$0xff] %v592
        %599 = vst [vmem:[#allocation3 + $0x10] sm:$0xff] %v594
        %600 = vst [vmem:[#allocation3 + $0x18] sm:$0xff] %v596
        %p601 = scmp.eq.s32.totalorder %s25, 0
        // Predicated region
        $region69: #{tpu_custom_call.1} parent=55 // pred_check
          %p602 = pneg %p601
        $region70: #{tpu_custom_call.1} parent=55 // pred_check_branch
          %604 = sbr.rel (%p602) target = $region72
        $region71: #{tpu_custom_call.1} parent=55 // pred_region
          %v605 = vld [vmem:[#allocation5] sm:$0xff]
          %606 = vst [vmem:[#allocation4] sm:$0xff] %v605
        $region72: #{tpu_custom_call.1} parent=55 // pred_fallthru
          _
        %v607 = vld [vmem:[#allocation10] sm:$0xff]
        %v608 = vld [vmem:[#allocation10 + $0x8] sm:$0xff]
        %v609 = vld [vmem:[#allocation10 + $0x10] sm:$0xff]
        %v610 = vld [vmem:[#allocation10 + $0x18] sm:$0xff]
        %v611 = vld [vmem:[#allocation10 + $0x20] sm:$0xff]
        %v612 = vld [vmem:[#allocation10 + $0x28] sm:$0xff]
        %v613 = vld [vmem:[#allocation10 + $0x30] sm:$0xff]
        %v614 = vld [vmem:[#allocation10 + $0x38] sm:$0xff]
        %v615 = vld [vmem:[#allocation10 + $0x40] sm:$0xff]
        %v616 = vld [vmem:[#allocation10 + $0x48] sm:$0xff]
        %v617 = vld [vmem:[#allocation10 + $0x50] sm:$0xff]
        %v618 = vld [vmem:[#allocation10 + $0x58] sm:$0xff]
        %v619 = vld [vmem:[#allocation10 + $0x60] sm:$0xff]
        %v620 = vld [vmem:[#allocation10 + $0x68] sm:$0xff]
        %v621 = vld [vmem:[#allocation10 + $0x70] sm:$0xff]
        %v622 = vld [vmem:[#allocation10 + $0x78] sm:$0xff]
        %v623 = vld [vmem:[#allocation10 + $0x80] sm:$0xff]
        %v624 = vld [vmem:[#allocation10 + $0x88] sm:$0xff]
        %v625 = vld [vmem:[#allocation10 + $0x90] sm:$0xff]
        %v626 = vld [vmem:[#allocation10 + $0x98] sm:$0xff]
        %v627 = vld [vmem:[#allocation10 + $0xa0] sm:$0xff]
        %v628 = vld [vmem:[#allocation10 + $0xa8] sm:$0xff]
        %v629 = vld [vmem:[#allocation10 + $0xb0] sm:$0xff]
        %v630 = vld [vmem:[#allocation10 + $0xb8] sm:$0xff]
        %v631 = vld [vmem:[#allocation10 + $0xc0] sm:$0xff]
        %v632 = vld [vmem:[#allocation10 + $0xc8] sm:$0xff]
        %v633 = vld [vmem:[#allocation10 + $0xd0] sm:$0xff]
        %v634 = vld [vmem:[#allocation10 + $0xd8] sm:$0xff]
        %v635 = vld [vmem:[#allocation10 + $0xe0] sm:$0xff]
        %v636 = vld [vmem:[#allocation10 + $0xe8] sm:$0xff]
        %v637 = vld [vmem:[#allocation10 + $0xf0] sm:$0xff]
        %v638 = vld [vmem:[#allocation10 + $0xf8] sm:$0xff]
        %v639 = vld [vmem:[%s8] sm:$0xff]
        %v640 = vld [vmem:[%s8 + $0x8] sm:$0xff]
        %v641 = vld [vmem:[%s8 + $0x10] sm:$0xff]
        %v642 = vld [vmem:[%s8 + $0x18] sm:$0xff]
        %v643 = vld [vmem:[%s8 + $0x20] sm:$0xff]
        %v644 = vld [vmem:[%s8 + $0x28] sm:$0xff]
        %v645 = vld [vmem:[%s8 + $0x30] sm:$0xff]
        %v646 = vld [vmem:[%s8 + $0x38] sm:$0xff]
        %v647 = vld [vmem:[%s8 + $0x40] sm:$0xff]
        %v648 = vld [vmem:[%s8 + $0x48] sm:$0xff]
        %v649 = vld [vmem:[%s8 + $0x50] sm:$0xff]
        %v650 = vld [vmem:[%s8 + $0x58] sm:$0xff]
        %v651 = vld [vmem:[%s8 + $0x60] sm:$0xff]
        %v652 = vld [vmem:[%s8 + $0x68] sm:$0xff]
        %v653 = vld [vmem:[%s8 + $0x70] sm:$0xff]
        %v654 = vld [vmem:[%s8 + $0x78] sm:$0xff]
        %v655 = vld [vmem:[#allocation4] sm:$0xff]
        %v656 = vld [vmem:[#allocation2] sm:$0xff]
        %v657 = vld [vmem:[#allocation2 + $0x8] sm:$0xff]
        %v658 = vld [vmem:[#allocation2 + $0x10] sm:$0xff]
        %v659 = vld [vmem:[#allocation3] sm:$0xff]
        %v660 = vmul.f32 %v659, %v655
        %661 = vmatpush.msra.mxu0 %v637
        %662 = vmatpush.msra.mxu0 %v635
        %663 = vmatpush.msra.mxu0 %v633
        %664 = vmatpush.msra.mxu0 %v631
        %665 = vmatpush.msra.mxu0 %v629
        %666 = vmatpush.msra.mxu0 %v627
        %667 = vmatpush.msra.mxu0 %v625
        %668 = vmatpush.msra.mxu0 %v623
        %669 = vmatpush.msra.mxu0 %v621
        %670 = vmatpush.msra.mxu0 %v619
        %671 = vmatpush.msra.mxu0 %v617
        %672 = vmatpush.msra.mxu0 %v615
        %673 = vmatpush.msra.mxu0 %v613
        %674 = vmatpush.msra.mxu0 %v611
        %675 = vmatpush.msra.mxu0 %v609
        %676 = vmatpush.msra.mxu0 %v607
        %677 = vmatmul.f32.gmra.mxu0 %v660
        %v678 = vpop.f32.mrf.mxu0
        %v679 = vadd.f32 0.0, %v678
        %680 = vdwg.mxu0
        %681 = vmatpush.msra.mxu0 %v638
        %682 = vmatpush.msra.mxu0 %v636
        %683 = vmatpush.msra.mxu0 %v634
        %684 = vmatpush.msra.mxu0 %v632
        %685 = vmatpush.msra.mxu0 %v630
        %686 = vmatpush.msra.mxu0 %v628
        %687 = vmatpush.msra.mxu0 %v626
        %688 = vmatpush.msra.mxu0 %v624
        %689 = vmatpush.msra.mxu0 %v622
        %690 = vmatpush.msra.mxu0 %v620
        %691 = vmatpush.msra.mxu0 %v618
        %692 = vmatpush.msra.mxu0 %v616
        %693 = vmatpush.msra.mxu0 %v614
        %694 = vmatpush.msra.mxu0 %v612
        %695 = vmatpush.msra.mxu0 %v610
        %696 = vmatpush.msra.mxu0 %v608
        %697 = vmatmul.f32.gmra.mxu0 %v660
        %v698 = vpop.f32.mrf.mxu0
        %v699 = vadd.f32 0.0, %v698
        %700 = vdwg.mxu0
        %v701 = vadd.f32 %v656, %v679
        %v702 = vadd.f32 %v657, %v699
        %v703 = vxor.u32 %v701, 2147483648
        %v704 = vxor.u32 %v702, 2147483648
        %v705 = vmul.f32 %v703, 1.442695
        %v706 = vpow.pop %v705
        %v707 = vmul.f32 %v704, 1.442695
        %v708 = vpow.pop %v707
        %v709 = vadd.f32 %v706, 1.0
        %v710 = vadd.f32 %v708, 1.0
        %v711 = vrcp.pop %v709
        %v712 = vmul.f32 %v709, %v711
        %v713 = vsub.f32 1.0, %v712
        %v714 = vmul.f32 %v711, %v713
        %v715 = vadd.f32 %v711, %v714
        %vm716 = vweird.f32 %v709
        %vm717 = vweird.f32 %v711
        %vm718 = vmor %vm716, %vm717
        %v719 = vsel %vm718, %v711, %v715
        %v720 = vand.u32 2147483647, %v709
        %vm721 = vcmp.eq.f32.partialorder %v720, 8.507059e+37
        %v722 = vand.u32 %v709, 2147483648
        %v723 = vor.u32 1.1754944e-38, %v722
        %v724 = vsel %vm721, %v723, %v719
        %v725 = vmul.f32 1.0, %v724
        %v726 = vrcp.pop %v710
        %v727 = vmul.f32 %v710, %v726
        %v728 = vsub.f32 1.0, %v727
        %v729 = vmul.f32 %v726, %v728
        %v730 = vadd.f32 %v726, %v729
        %vm731 = vweird.f32 %v710
        %vm732 = vweird.f32 %v726
        %vm733 = vmor %vm731, %vm732
        %v734 = vsel %vm733, %v726, %v730
        %v735 = vand.u32 2147483647, %v710
        %vm736 = vcmp.eq.f32.partialorder %v735, 8.507059e+37
        %v737 = vand.u32 %v710, 2147483648
        %v738 = vor.u32 1.1754944e-38, %v737
        %v739 = vsel %vm736, %v738, %v734
        %v740 = vmul.f32 1.0, %v739
        %v741 = vmul.f32 %v740, %v660
        %742 = vmatpush.msra.mxu0 %v654
        %743 = vmatpush.msra.mxu0 %v653
        %744 = vmatpush.msra.mxu0 %v652
        %745 = vmatpush.msra.mxu0 %v651
        %746 = vmatpush.msra.mxu0 %v650
        %747 = vmatpush.msra.mxu0 %v649
        %748 = vmatpush.msra.mxu0 %v648
        %749 = vmatpush.msra.mxu0 %v647
        %750 = vmatpush.msra.mxu0 %v646
        %751 = vmatpush.msra.mxu0 %v645
        %752 = vmatpush.msra.mxu0 %v644
        %753 = vmatpush.msra.mxu0 %v643
        %754 = vmatpush.msra.mxu0 %v642
        %755 = vmatpush.msra.mxu0 %v641
        %756 = vmatpush.msra.mxu0 %v640
        %757 = vmatpush.msra.mxu0 %v639
        %758 = vmatmul.f32.gmra.mxu0 %v741
        %v759 = vpop.f32.mrf.mxu0
        %v760 = vadd.f32 0.0, %v759
        %761 = vdwg.mxu0
        %v762 = vadd.f32 %v658, %v760
        %v763 = vtanh.pop %v762
        %v764 = vmul.f32 %v725, %v660
        %v765 = vsub.f32 1.0, %v725
        %v766 = vmul.f32 %v765, %v763
        %v767 = vadd.f32 %v764, %v766
        %768 = vst [vmem:[%s390] sm:$0xff] %v767
        %v769 = vld [vmem:[#allocation2 + $0x18] sm:$0xff]
        %v770 = vld [vmem:[#allocation2 + $0x20] sm:$0xff]
        %v771 = vld [vmem:[#allocation2 + $0x28] sm:$0xff]
        %v772 = vld [vmem:[#allocation3 + $0x8] sm:$0xff]
        %v773 = vmul.f32 %v772, %v767
        %774 = vmatpush.msra.mxu0 %v637
        %775 = vmatpush.msra.mxu0 %v635
        %776 = vmatpush.msra.mxu0 %v633
        %777 = vmatpush.msra.mxu0 %v631
        %778 = vmatpush.msra.mxu0 %v629
        %779 = vmatpush.msra.mxu0 %v627
        %780 = vmatpush.msra.mxu0 %v625
        %781 = vmatpush.msra.mxu0 %v623
        %782 = vmatpush.msra.mxu0 %v621
        %783 = vmatpush.msra.mxu0 %v619
        %784 = vmatpush.msra.mxu0 %v617
        %785 = vmatpush.msra.mxu0 %v615
        %786 = vmatpush.msra.mxu0 %v613
        %787 = vmatpush.msra.mxu0 %v611
        %788 = vmatpush.msra.mxu0 %v609
        %789 = vmatpush.msra.mxu0 %v607
        %790 = vmatmul.f32.gmra.mxu0 %v773
        %v791 = vpop.f32.mrf.mxu0
        %v792 = vadd.f32 0.0, %v791
        %793 = vdwg.mxu0
        %794 = vmatpush.msra.mxu0 %v638
        %795 = vmatpush.msra.mxu0 %v636
        %796 = vmatpush.msra.mxu0 %v634
        %797 = vmatpush.msra.mxu0 %v632
        %798 = vmatpush.msra.mxu0 %v630
        %799 = vmatpush.msra.mxu0 %v628
        %800 = vmatpush.msra.mxu0 %v626
        %801 = vmatpush.msra.mxu0 %v624
        %802 = vmatpush.msra.mxu0 %v622
        %803 = vmatpush.msra.mxu0 %v620
        %804 = vmatpush.msra.mxu0 %v618
        %805 = vmatpush.msra.mxu0 %v616
        %806 = vmatpush.msra.mxu0 %v614
        %807 = vmatpush.msra.mxu0 %v612
        %808 = vmatpush.msra.mxu0 %v610
        %809 = vmatpush.msra.mxu0 %v608
        %810 = vmatmul.f32.gmra.mxu0 %v773
        %v811 = vpop.f32.mrf.mxu0
        %v812 = vadd.f32 0.0, %v811
        %813 = vdwg.mxu0
        %v814 = vadd.f32 %v769, %v792
        %v815 = vadd.f32 %v770, %v812
        %v816 = vxor.u32 %v814, 2147483648
        %v817 = vxor.u32 %v815, 2147483648
        %v818 = vmul.f32 %v816, 1.442695
        %v819 = vpow.pop %v818
        %v820 = vmul.f32 %v817, 1.442695
        %v821 = vpow.pop %v820
        %v822 = vadd.f32 %v819, 1.0
        %v823 = vadd.f32 %v821, 1.0
        %v824 = vrcp.pop %v822
        %v825 = vmul.f32 %v822, %v824
        %v826 = vsub.f32 1.0, %v825
        %v827 = vmul.f32 %v824, %v826
        %v828 = vadd.f32 %v824, %v827
        %vm829 = vweird.f32 %v822
        %vm830 = vweird.f32 %v824
        %vm831 = vmor %vm829, %vm830
        %v832 = vsel %vm831, %v824, %v828
        %v833 = vand.u32 2147483647, %v822
        %vm834 = vcmp.eq.f32.partialorder %v833, 8.507059e+37
        %v835 = vand.u32 %v822, 2147483648
        %v836 = vor.u32 1.1754944e-38, %v835
        %v837 = vsel %vm834, %v836, %v832
        %v838 = vmul.f32 1.0, %v837
        %v839 = vrcp.pop %v823
        %v840 = vmul.f32 %v823, %v839
        %v841 = vsub.f32 1.0, %v840
        %v842 = vmul.f32 %v839, %v841
        %v843 = vadd.f32 %v839, %v842
        %vm844 = vweird.f32 %v823
        %vm845 = vweird.f32 %v839
        %vm846 = vmor %vm844, %vm845
        %v847 = vsel %vm846, %v839, %v843
        %v848 = vand.u32 2147483647, %v823
        %vm849 = vcmp.eq.f32.partialorder %v848, 8.507059e+37
        %v850 = vand.u32 %v823, 2147483648
        %v851 = vor.u32 1.1754944e-38, %v850
        %v852 = vsel %vm849, %v851, %v847
        %v853 = vmul.f32 1.0, %v852
        %v854 = vmul.f32 %v853, %v773
        %855 = vmatpush.msra.mxu0 %v654
        %856 = vmatpush.msra.mxu0 %v653
        %857 = vmatpush.msra.mxu0 %v652
        %858 = vmatpush.msra.mxu0 %v651
        %859 = vmatpush.msra.mxu0 %v650
        %860 = vmatpush.msra.mxu0 %v649
        %861 = vmatpush.msra.mxu0 %v648
        %862 = vmatpush.msra.mxu0 %v647
        %863 = vmatpush.msra.mxu0 %v646
        %864 = vmatpush.msra.mxu0 %v645
        %865 = vmatpush.msra.mxu0 %v644
        %866 = vmatpush.msra.mxu0 %v643
        %867 = vmatpush.msra.mxu0 %v642
        %868 = vmatpush.msra.mxu0 %v641
        %869 = vmatpush.msra.mxu0 %v640
        %870 = vmatpush.msra.mxu0 %v639
        %871 = vmatmul.f32.gmra.mxu0 %v854
        %v872 = vpop.f32.mrf.mxu0
        %v873 = vadd.f32 0.0, %v872
        %874 = vdwg.mxu0
        %v875 = vadd.f32 %v771, %v873
        %v876 = vtanh.pop %v875
        %v877 = vmul.f32 %v838, %v773
        %v878 = vsub.f32 1.0, %v838
        %v879 = vmul.f32 %v878, %v876
        %v880 = vadd.f32 %v877, %v879
        %881 = vst [vmem:[%s390 + $0x8] sm:$0xff] %v880
        %v882 = vld [vmem:[#allocation2 + $0x30] sm:$0xff]
        %v883 = vld [vmem:[#allocation2 + $0x38] sm:$0xff]
        %v884 = vld [vmem:[#allocation2 + $0x40] sm:$0xff]
        %v885 = vld [vmem:[#allocation3 + $0x10] sm:$0xff]
        %v886 = vmul.f32 %v885, %v880
        %887 = vmatpush.msra.mxu0 %v637
        %888 = vmatpush.msra.mxu0 %v635
        %889 = vmatpush.msra.mxu0 %v633
        %890 = vmatpush.msra.mxu0 %v631
        %891 = vmatpush.msra.mxu0 %v629
        %892 = vmatpush.msra.mxu0 %v627
        %893 = vmatpush.msra.mxu0 %v625
        %894 = vmatpush.msra.mxu0 %v623
        %895 = vmatpush.msra.mxu0 %v621
        %896 = vmatpush.msra.mxu0 %v619
        %897 = vmatpush.msra.mxu0 %v617
        %898 = vmatpush.msra.mxu0 %v615
        %899 = vmatpush.msra.mxu0 %v613
        %900 = vmatpush.msra.mxu0 %v611
        %901 = vmatpush.msra.mxu0 %v609
        %902 = vmatpush.msra.mxu0 %v607
        %903 = vmatmul.f32.gmra.mxu0 %v886
        %v904 = vpop.f32.mrf.mxu0
        %v905 = vadd.f32 0.0, %v904
        %906 = vdwg.mxu0
        %907 = vmatpush.msra.mxu0 %v638
        %908 = vmatpush.msra.mxu0 %v636
        %909 = vmatpush.msra.mxu0 %v634
        %910 = vmatpush.msra.mxu0 %v632
        %911 = vmatpush.msra.mxu0 %v630
        %912 = vmatpush.msra.mxu0 %v628
        %913 = vmatpush.msra.mxu0 %v626
        %914 = vmatpush.msra.mxu0 %v624
        %915 = vmatpush.msra.mxu0 %v622
        %916 = vmatpush.msra.mxu0 %v620
        %917 = vmatpush.msra.mxu0 %v618
        %918 = vmatpush.msra.mxu0 %v616
        %919 = vmatpush.msra.mxu0 %v614
        %920 = vmatpush.msra.mxu0 %v612
        %921 = vmatpush.msra.mxu0 %v610
        %922 = vmatpush.msra.mxu0 %v608
        %923 = vmatmul.f32.gmra.mxu0 %v886
        %v924 = vpop.f32.mrf.mxu0
        %v925 = vadd.f32 0.0, %v924
        %926 = vdwg.mxu0
        %v927 = vadd.f32 %v882, %v905
        %v928 = vadd.f32 %v883, %v925
        %v929 = vxor.u32 %v927, 2147483648
        %v930 = vxor.u32 %v928, 2147483648
        %v931 = vmul.f32 %v929, 1.442695
        %v932 = vpow.pop %v931
        %v933 = vmul.f32 %v930, 1.442695
        %v934 = vpow.pop %v933
        %v935 = vadd.f32 %v932, 1.0
        %v936 = vadd.f32 %v934, 1.0
        %v937 = vrcp.pop %v935
        %v938 = vmul.f32 %v935, %v937
        %v939 = vsub.f32 1.0, %v938
        %v940 = vmul.f32 %v937, %v939
        %v941 = vadd.f32 %v937, %v940
        %vm942 = vweird.f32 %v935
        %vm943 = vweird.f32 %v937
        %vm944 = vmor %vm942, %vm943
        %v945 = vsel %vm944, %v937, %v941
        %v946 = vand.u32 2147483647, %v935
        %vm947 = vcmp.eq.f32.partialorder %v946, 8.507059e+37
        %v948 = vand.u32 %v935, 2147483648
        %v949 = vor.u32 1.1754944e-38, %v948
        %v950 = vsel %vm947, %v949, %v945
        %v951 = vmul.f32 1.0, %v950
        %v952 = vrcp.pop %v936
        %v953 = vmul.f32 %v936, %v952
        %v954 = vsub.f32 1.0, %v953
        %v955 = vmul.f32 %v952, %v954
        %v956 = vadd.f32 %v952, %v955
        %vm957 = vweird.f32 %v936
        %vm958 = vweird.f32 %v952
        %vm959 = vmor %vm957, %vm958
        %v960 = vsel %vm959, %v952, %v956
        %v961 = vand.u32 2147483647, %v936
        %vm962 = vcmp.eq.f32.partialorder %v961, 8.507059e+37
        %v963 = vand.u32 %v936, 2147483648
        %v964 = vor.u32 1.1754944e-38, %v963
        %v965 = vsel %vm962, %v964, %v960
        %v966 = vmul.f32 1.0, %v965
        %v967 = vmul.f32 %v966, %v886
        %968 = vmatpush.msra.mxu0 %v654
        %969 = vmatpush.msra.mxu0 %v653
        %970 = vmatpush.msra.mxu0 %v652
        %971 = vmatpush.msra.mxu0 %v651
        %972 = vmatpush.msra.mxu0 %v650
        %973 = vmatpush.msra.mxu0 %v649
        %974 = vmatpush.msra.mxu0 %v648
        %975 = vmatpush.msra.mxu0 %v647
        %976 = vmatpush.msra.mxu0 %v646
        %977 = vmatpush.msra.mxu0 %v645
        %978 = vmatpush.msra.mxu0 %v644
        %979 = vmatpush.msra.mxu0 %v643
        %980 = vmatpush.msra.mxu0 %v642
        %981 = vmatpush.msra.mxu0 %v641
        %982 = vmatpush.msra.mxu0 %v640
        %983 = vmatpush.msra.mxu0 %v639
        %984 = vmatmul.f32.gmra.mxu0 %v967
        %v985 = vpop.f32.mrf.mxu0
        %v986 = vadd.f32 0.0, %v985
        %987 = vdwg.mxu0
        %v988 = vadd.f32 %v884, %v986
        %v989 = vtanh.pop %v988
        %v990 = vmul.f32 %v951, %v886
        %v991 = vsub.f32 1.0, %v951
        %v992 = vmul.f32 %v991, %v989
        %v993 = vadd.f32 %v990, %v992
        %994 = vst [vmem:[%s390 + $0x10] sm:$0xff] %v993
        %v995 = vld [vmem:[#allocation2 + $0x48] sm:$0xff]
        %v996 = vld [vmem:[#allocation2 + $0x50] sm:$0xff]
        %v997 = vld [vmem:[#allocation2 + $0x58] sm:$0xff]
        %v998 = vld [vmem:[#allocation3 + $0x18] sm:$0xff]
        %v999 = vmul.f32 %v998, %v993
        %1000 = vmatpush.msra.mxu0 %v637
        %1001 = vmatpush.msra.mxu0 %v635
        %1002 = vmatpush.msra.mxu0 %v633
        %1003 = vmatpush.msra.mxu0 %v631
        %1004 = vmatpush.msra.mxu0 %v629
        %1005 = vmatpush.msra.mxu0 %v627
        %1006 = vmatpush.msra.mxu0 %v625
        %1007 = vmatpush.msra.mxu0 %v623
        %1008 = vmatpush.msra.mxu0 %v621
        %1009 = vmatpush.msra.mxu0 %v619
        %1010 = vmatpush.msra.mxu0 %v617
        %1011 = vmatpush.msra.mxu0 %v615
        %1012 = vmatpush.msra.mxu0 %v613
        %1013 = vmatpush.msra.mxu0 %v611
        %1014 = vmatpush.msra.mxu0 %v609
        %1015 = vmatpush.msra.mxu0 %v607
        %1016 = vmatmul.f32.gmra.mxu0 %v999
        %v1017 = vpop.f32.mrf.mxu0
        %v1018 = vadd.f32 0.0, %v1017
        %1019 = vdwg.mxu0
        %1020 = vmatpush.msra.mxu0 %v638
        %1021 = vmatpush.msra.mxu0 %v636
        %1022 = vmatpush.msra.mxu0 %v634
        %1023 = vmatpush.msra.mxu0 %v632
        %1024 = vmatpush.msra.mxu0 %v630
        %1025 = vmatpush.msra.mxu0 %v628
        %1026 = vmatpush.msra.mxu0 %v626
        %1027 = vmatpush.msra.mxu0 %v624
        %1028 = vmatpush.msra.mxu0 %v622
        %1029 = vmatpush.msra.mxu0 %v620
        %1030 = vmatpush.msra.mxu0 %v618
        %1031 = vmatpush.msra.mxu0 %v616
        %1032 = vmatpush.msra.mxu0 %v614
        %1033 = vmatpush.msra.mxu0 %v612
        %1034 = vmatpush.msra.mxu0 %v610
        %1035 = vmatpush.msra.mxu0 %v608
        %1036 = vmatmul.f32.gmra.mxu0 %v999
        %v1037 = vpop.f32.mrf.mxu0
        %v1038 = vadd.f32 0.0, %v1037
        %1039 = vdwg.mxu0
        %v1040 = vadd.f32 %v995, %v1018
        %v1041 = vadd.f32 %v996, %v1038
        %v1042 = vxor.u32 %v1040, 2147483648
        %v1043 = vxor.u32 %v1041, 2147483648
        %v1044 = vmul.f32 %v1042, 1.442695
        %v1045 = vpow.pop %v1044
        %v1046 = vmul.f32 %v1043, 1.442695
        %v1047 = vpow.pop %v1046
        %v1048 = vadd.f32 %v1045, 1.0
        %v1049 = vadd.f32 %v1047, 1.0
        %v1050 = vrcp.pop %v1048
        %v1051 = vmul.f32 %v1048, %v1050
        %v1052 = vsub.f32 1.0, %v1051
        %v1053 = vmul.f32 %v1050, %v1052
        %v1054 = vadd.f32 %v1050, %v1053
        %vm1055 = vweird.f32 %v1048
        %vm1056 = vweird.f32 %v1050
        %vm1057 = vmor %vm1055, %vm1056
        %v1058 = vsel %vm1057, %v1050, %v1054
        %v1059 = vand.u32 2147483647, %v1048
        %vm1060 = vcmp.eq.f32.partialorder %v1059, 8.507059e+37
        %v1061 = vand.u32 %v1048, 2147483648
        %v1062 = vor.u32 1.1754944e-38, %v1061
        %v1063 = vsel %vm1060, %v1062, %v1058
        %v1064 = vmul.f32 1.0, %v1063
        %v1065 = vrcp.pop %v1049
        %v1066 = vmul.f32 %v1049, %v1065
        %v1067 = vsub.f32 1.0, %v1066
        %v1068 = vmul.f32 %v1065, %v1067
        %v1069 = vadd.f32 %v1065, %v1068
        %vm1070 = vweird.f32 %v1049
        %vm1071 = vweird.f32 %v1065
        %vm1072 = vmor %vm1070, %vm1071
        %v1073 = vsel %vm1072, %v1065, %v1069
        %v1074 = vand.u32 2147483647, %v1049
        %vm1075 = vcmp.eq.f32.partialorder %v1074, 8.507059e+37
        %v1076 = vand.u32 %v1049, 2147483648
        %v1077 = vor.u32 1.1754944e-38, %v1076
        %v1078 = vsel %vm1075, %v1077, %v1073
        %v1079 = vmul.f32 1.0, %v1078
        %v1080 = vmul.f32 %v1079, %v999
        %1081 = vmatpush.msra.mxu0 %v654
        %1082 = vmatpush.msra.mxu0 %v653
        %1083 = vmatpush.msra.mxu0 %v652
        %1084 = vmatpush.msra.mxu0 %v651
        %1085 = vmatpush.msra.mxu0 %v650
        %1086 = vmatpush.msra.mxu0 %v649
        %1087 = vmatpush.msra.mxu0 %v648
        %1088 = vmatpush.msra.mxu0 %v647
        %1089 = vmatpush.msra.mxu0 %v646
        %1090 = vmatpush.msra.mxu0 %v645
        %1091 = vmatpush.msra.mxu0 %v644
        %1092 = vmatpush.msra.mxu0 %v643
        %1093 = vmatpush.msra.mxu0 %v642
        %1094 = vmatpush.msra.mxu0 %v641
        %1095 = vmatpush.msra.mxu0 %v640
        %1096 = vmatpush.msra.mxu0 %v639
        %1097 = vmatmul.f32.gmra.mxu0 %v1080
        %v1098 = vpop.f32.mrf.mxu0
        %v1099 = vadd.f32 0.0, %v1098
        %1100 = vdwg.mxu0
        %v1101 = vadd.f32 %v997, %v1099
        %v1102 = vtanh.pop %v1101
        %v1103 = vmul.f32 %v1064, %v999
        %v1104 = vsub.f32 1.0, %v1064
        %v1105 = vmul.f32 %v1104, %v1102
        %v1106 = vadd.f32 %v1103, %v1105
        %1107 = vst [vmem:[%s390 + $0x18] sm:$0xff] %v1106
        %1108 = vst [vmem:[#allocation4] sm:$0xff] %v1106
        %s1109 = sand.u32 %s232, 1
        %s1110 = scalar_lea.sflag [#allocation7], %s1109
        %s1111 = sand.u32 %s232, 1
        %s1112 = smul.addr %s1111, 32
        %s1113 = scalar_lea.vmem [#allocation11], %s1112
        // Predicated region
        $region73: #{tpu_custom_call.1} parent=55 // pred_check
          %p1114 = pneg %p242
        $region74: #{tpu_custom_call.1} parent=55 // pred_check_branch
          %1116 = sbr.rel (%p1114) target = $region76
        $region75: #{tpu_custom_call.1} parent=55 // pred_region
          %s1117 = smul.u32 4, %s25
          %1119 = vsyncadd %s1110, 0
          %s1120 = smul.addr %s1117, 8
          %s1121 = scalar_lea.hbm %s9, %s1120
          %s1122 = sshll.u32 %s1113, 4
          %s1123 = int_to_ptr.vmem [resolvable:$true] %s1122
          %s1124 = sshll.u32 %s1121, 4
          %s1125 = int_to_ptr.hbm [resolvable:$true] %s1124
          %1130 = dma.vmem_to_hbm [thread:$0]  %s1123, 512, %s1125, %s1110, 128, 128, 8
        $region76: #{tpu_custom_call.1} parent=55 // pred_fallthru
          _
      $region56: #{tpu_custom_call.1} parent=5 // pred_fallthru
        _
      %p1131 = scmp.le.s32.totalorder 2, %s20
      // Predicated region
      $region77: #{tpu_custom_call.1} parent=5 // pred_check
        %p1132 = pneg %p1131
      $region78: #{tpu_custom_call.1} parent=5 // pred_check_branch
        %1134 = sbr.rel (%p1132) target = $region80
      $region79: #{tpu_custom_call.1} parent=5 // pred_region
        %s1135 = ssub.s32 %s20, 2
        // Predicated region
        $region81: #{tpu_custom_call.1} parent=79 // pred_check
          %p1136 = pneg %p248
        $region82: #{tpu_custom_call.1} parent=79 // pred_check_branch
          %1138 = sbr.rel (%p1136) target = $region84
        $region83: #{tpu_custom_call.1} parent=79 // pred_region
          %s1139 = sand.u32 %s233, 1
          %s1140 = scalar_lea.sflag [#allocation7], %s1139
          %s1141 = sand.u32 %s233, 1
          %s1142 = smul.addr %s1141, 32
          %s1143 = scalar_lea.vmem [#allocation11], %s1142
          %1145 = dma.done %s1140, 512
        $region84: #{tpu_custom_call.1} parent=79 // pred_fallthru
          _
      $region80: #{tpu_custom_call.1} parent=5 // pred_fallthru
        _
    $region6: #{tpu_custom_call.1} parent=1 // loop_footer
      %s24 = sadd.s32 1, %s20
    $region7: #{tpu_custom_call.1} parent=1 // loop_footer_branch
      %19 = sbr.rel target = $region3
    $region8: #{tpu_custom_call.1} parent=1 // loop_exit
      _
    %1146 = vsyncpa [#allocation6], 1
    %s1147 = scalar_lea.sflag [#allocation6], 1
    %1148 = vsyncpa %s1147, 1
    %1149 = vsyncpa [#allocation9], 1
    %1150 = vsyncpa [#allocation7], 1
    %s1151 = scalar_lea.sflag [#allocation7], 1
    %1152 = vsyncpa %s1151, 1

</llo_original>
